<compile_context>
chip_gen: v7x
topology: tpu7x:2x2x1
jax: 0.10.0
libtpu: 0.0.40
codegen_flags: <defaults>
</compile_context>

<pallas_src>
import functools

import jax
import jax.numpy as jnp
from jax.experimental import pallas as pl
from jax.experimental.pallas import tpu as pltpu


_VMEM = pl.BlockSpec(memory_space=pltpu.MemorySpace.VMEM)


def _cp():
    # <= half of v7x's 64 MiB VMEM per TensorCore; also safe on v5e/v6e.
    return pltpu.CompilerParams(vmem_limit_bytes=32 * 1024 * 1024)


# --------------------------- geometry helpers (host) -------------------------

def _valid_mask(n, h, w):
    """[N*(H+2)*(W+2), 1] f32: 1.0 at real pixels, 0.0 at zero-pad positions."""
    hp, wp = h + 2, w + 2
    py = jnp.arange(hp)[:, None]
    px = jnp.arange(wp)[None, :]
    m = ((py >= 1) & (py <= h) & (px >= 1) & (px <= w)).astype(jnp.float32)
    m = jnp.broadcast_to(m.reshape(1, hp * wp), (n, hp * wp))
    return m.reshape(n * hp * wp, 1)


def _pad_flatten(x_nhwc):
    n, h, w, c = x_nhwc.shape
    xp = jnp.pad(x_nhwc, ((0, 0), (1, 1), (1, 1), (0, 0)))
    return xp.reshape(n * (h + 2) * (w + 2), c)


# --------------------------------- kernels -----------------------------------

def _stem_kernel(p_ref, w_ref, s_ref, b_ref, mask_ref, o_ref):
    # 3x3 conv (pre-gathered taps, K padded to 32) + folded BN + ReLU.
    acc = jnp.dot(p_ref[...], w_ref[...], preferred_element_type=jnp.float32)
    acc = jnp.maximum(acc * s_ref[...] + b_ref[...], 0.0) * mask_ref[...]
    o_ref[...] = acc.astype(o_ref.dtype)


def _block_s1_kernel(x_ref, w1_ref, s1_ref, b1_ref, w2_ref, s2_ref, b2_ref,
                     mask_ref, o_ref, y_ref, *, n, h, w):
    """Fused stride-1 BasicBlock (identity shortcut, Cin == Cout)."""
    hp, wp = h + 2, w + 2
    r0 = wp + 1                                   # first valid row
    m = (n - 1) * hp * wp + (h - 1) * wp + w      # first..last valid row span
    c = x_ref.shape[-1]
    mask = mask_ref[pl.ds(r0, m), :]

    # conv1: 9 shifted 2D MXU matmuls over the padded-flattened tile.
    acc = jnp.zeros((m, c), jnp.float32)
    for t in range(9):
        ky, kx = divmod(t, 3)
        d = (ky - 1) * wp + (kx - 1)
        acc = acc + jnp.dot(x_ref[pl.ds(r0 + d, m), :],
                            w1_ref[pl.ds(t * c, c), :],
                            preferred_element_type=jnp.float32)
    y = jnp.maximum(acc * s1_ref[...] + b1_ref[...], 0.0) * mask
    # Intermediate never leaves VMEM (same padded-flattened layout, pads zeroed).
    y_ref[...] = jnp.zeros(y_ref.shape, y_ref.dtype)
    y_ref[pl.ds(r0, m), :] = y.astype(y_ref.dtype)

    # conv2 + BN + residual add + final ReLU.
    acc2 = jnp.zeros((m, c), jnp.float32)
    for t in range(9):
        ky, kx = divmod(t, 3)
        d = (ky - 1) * wp + (kx - 1)
        acc2 = acc2 + jnp.dot(y_ref[pl.ds(r0 + d, m), :],
                              w2_ref[pl.ds(t * c, c), :],
                              preferred_element_type=jnp.float32)
    res = x_ref[pl.ds(r0, m), :].astype(jnp.float32)
    out = jnp.maximum(acc2 * s2_ref[...] + b2_ref[...] + res, 0.0) * mask
    o_ref[...] = jnp.zeros(o_ref.shape, o_ref.dtype)
    o_ref[pl.ds(r0, m), :] = out.astype(o_ref.dtype)


def _block_s2_kernel(p_ref, xs_ref, w1_ref, s1_ref, b1_ref,
                     w2_ref, s2_ref, b2_ref, ws_ref, ss_ref, bs_ref,
                     mask_ref, o_ref, y_ref, *, n, ho, wo):
    """Fused stride-2 BasicBlock (1x1 projection shortcut, Cin != Cout)."""
    hp, wp = ho + 2, wo + 2
    r0 = wp + 1
    m = (n - 1) * hp * wp + (ho - 1) * wp + wo
    cout = ws_ref.shape[-1]

    # conv1 (stride 2, taps pre-gathered so K = 9*Cin fills the MXU) + BN + ReLU.
    acc1 = jnp.dot(p_ref[...], w1_ref[...], preferred_element_type=jnp.float32)
    y = jnp.maximum(acc1 * s1_ref[...] + b1_ref[...], 0.0) * mask_ref[...]
    y_ref[...] = y.astype(y_ref.dtype)

    # conv2 (stride 1) on the VMEM-resident intermediate via shifted matmuls.
    acc2 = jnp.zeros((m, cout), jnp.float32)
    for t in range(9):
        ky, kx = divmod(t, 3)
        d = (ky - 1) * wp + (kx - 1)
        acc2 = acc2 + jnp.dot(y_ref[pl.ds(r0 + d, m), :],
                              w2_ref[pl.ds(t * cout, cout), :],
                              preferred_element_type=jnp.float32)

    # 1x1 stride-2 projection shortcut + BN.
    sc = jnp.dot(xs_ref[pl.ds(r0, m), :], ws_ref[...],
                 preferred_element_type=jnp.float32)
    sc = sc * ss_ref[...] + bs_ref[...]

    mask = mask_ref[pl.ds(r0, m), :]
    out = jnp.maximum(acc2 * s2_ref[...] + b2_ref[...] + sc, 0.0) * mask
    o_ref[...] = jnp.zeros(o_ref.shape, o_ref.dtype)
    o_ref[pl.ds(r0, m), :] = out.astype(o_ref.dtype)


def _avgpool_fc_kernel(sel_ref, x_ref, w_ref, b_ref, o_ref):
    # Global average pool as a tiny per-image selector matmul (pad rows are
    # exact zeros, so summing every row of an image's tile is exact), then FC.
    pooled = jnp.dot(sel_ref[...], x_ref[...], preferred_element_type=jnp.float32)
    o_ref[...] = (jnp.dot(pooled, w_ref[...], preferred_element_type=jnp.float32)
                  + b_ref[...])


# -------------------------------- wrappers -----------------------------------

def stem_forward(x_nhwc, w, scale, bias):
    n, h, wd, cin = x_nhwc.shape
    kh, kw, _, cout = w.shape
    xp = jnp.pad(x_nhwc, ((0, 0), (1, 1), (1, 1), (0, 0)))
    taps = [xp[:, ky:ky + h, kx:kx + wd, :] for ky in range(kh) for kx in range(kw)]
    patches = jnp.concatenate(taps, axis=-1)                  # [n, h, w, 27]
    k = kh * kw * cin
    kpad = max(8, ((k + 7) // 8) * 8)                         # 27 -> 32
    patches = jnp.pad(patches, ((0, 0), (0, 0), (0, 0), (0, kpad - k)))
    p_flat = _pad_flatten(patches).astype(jnp.bfloat16)       # [n*(h+2)*(w+2), 32]
    w2 = jnp.pad(w.reshape(k, cout), ((0, kpad - k), (0, 0))).astype(jnp.bfloat16)
    mask = _valid_mask(n, h, wd)
    total = n * (h + 2) * (wd + 2)
    out = pl.pallas_call(
        _stem_kernel,
        out_shape=jax.ShapeDtypeStruct((total, cout), jnp.bfloat16),
        in_specs=[_VMEM] * 5, out_specs=_VMEM,
        compiler_params=_cp(),
    )(p_flat, w2, scale.reshape(1, cout), bias.reshape(1, cout), mask)
    return out, (n, h, wd, cout)


def basic_block_s1(a_flat, p, geom):
    n, h, w, c = geom
    assert not p["has_shortcut"]
    total = n * (h + 2) * (w + 2)
    s1, b1 = p["bn1"]
    s2, b2 = p["bn2"]
    w1 = p["w1"].reshape(9 * c, c).astype(jnp.bfloat16)
    w2 = p["w2"].reshape(9 * c, c).astype(jnp.bfloat16)
    mask = _valid_mask(n, h, w)
    out = pl.pallas_call(
        functools.partial(_block_s1_kernel, n=n, h=h, w=w),
        out_shape=jax.ShapeDtypeStruct((total, c), jnp.bfloat16),
        in_specs=[_VMEM] * 8, out_specs=_VMEM,
        scratch_shapes=[pltpu.VMEM((total, c), jnp.bfloat16)],
        compiler_params=_cp(),
    )(a_flat, w1, s1.reshape(1, c), b1.reshape(1, c),
      w2, s2.reshape(1, c), b2.reshape(1, c), mask)
    return out, geom


def basic_block_s2(a_flat, p, geom):
    n, h, w, cin = geom
    cout = p["w1"].shape[-1]
    ho, wo = h // 2, w // 2
    total_o = n * (ho + 2) * (wo + 2)
    a4 = a_flat.reshape(n, h + 2, w + 2, cin)
    # Gather the 9 stride-2 taps (cheap JAX glue on the downsampled grid).
    taps = [a4[:, ky:ky + 2 * ho:2, kx:kx + 2 * wo:2, :]
            for ky in range(3) for kx in range(3)]
    patches = jnp.concatenate(taps, axis=-1)                  # [n, ho, wo, 9*cin]
    patches = jnp.pad(patches, ((0, 0), (1, 1), (1, 1), (0, 0)))
    p_flat = patches.reshape(total_o, 9 * cin).astype(jnp.bfloat16)
    # Stride-2-sampled input for the 1x1 projection shortcut.
    xs = a4[:, 1:1 + h:2, 1:1 + w:2, :]
    xs = jnp.pad(xs, ((0, 0), (1, 1), (1, 1), (0, 0))).reshape(total_o, cin)
    xs = xs.astype(jnp.bfloat16)

    w1 = p["w1"].reshape(9 * cin, cout).astype(jnp.bfloat16)
    w2 = p["w2"].reshape(9 * cout, cout).astype(jnp.bfloat16)
    ws = p["ws"].reshape(cin, cout).astype(jnp.bfloat16)
    s1, b1 = p["bn1"]
    s2, b2 = p["bn2"]
    ss, bs = p["bns"]
    mask = _valid_mask(n, ho, wo)
    out = pl.pallas_call(
        functools.partial(_block_s2_kernel, n=n, ho=ho, wo=wo),
        out_shape=jax.ShapeDtypeStruct((total_o, cout), jnp.bfloat16),
        in_specs=[_VMEM] * 12, out_specs=_VMEM,
        scratch_shapes=[pltpu.VMEM((total_o, cout), jnp.bfloat16)],
        compiler_params=_cp(),
    )(p_flat, xs, w1, s1.reshape(1, cout), b1.reshape(1, cout),
      w2, s2.reshape(1, cout), b2.reshape(1, cout),
      ws, ss.reshape(1, cout), bs.reshape(1, cout), mask)
    return out, (n, ho, wo, cout)


# --------------------------- parameter construction --------------------------

def _fold_bn(key, c):
    k1, k2, k3, k4 = jax.random.split(key, 4)
    gamma = 1.0 + 0.1 * jax.random.normal(k1, (c,), jnp.float32)
    beta = 0.1 * jax.random.normal(k2, (c,), jnp.float32)
    mean = 0.1 * jax.random.normal(k3, (c,), jnp.float32)
    var = 1.0 + 0.1 * jnp.abs(jax.random.normal(k4, (c,), jnp.float32))
    scale = gamma / jnp.sqrt(var + 1e-5)
    bias = beta - mean * scale
    return scale, bias


def _conv_w(key, kh, kw, cin, cout):
    fan_in = kh * kw * cin
    return jax.random.normal(key, (kh, kw, cin, cout), jnp.float32) * (2.0 / fan_in) ** 0.5


def _make_basic_block(key, cin, cout, stride):
    ks = jax.random.split(key, 6)
    p = {
        "w1": _conv_w(ks[0], 3, 3, cin, cout),
        "bn1": _fold_bn(ks[1], cout),
        "w2": _conv_w(ks[2], 3, 3, cout, cout),
        "bn2": _fold_bn(ks[3], cout),
        "stride": stride,
        "has_shortcut": (stride != 1) or (cin != cout),
    }
    if p["has_shortcut"]:
        p["ws"] = _conv_w(ks[4], 1, 1, cin, cout)
        p["bns"] = _fold_bn(ks[5], cout)
    return p


def build_resnet_params(key, layers=(2, 2, 2, 2), num_classes=100):
    keys = jax.random.split(key, 8)
    params = {
        "conv1_w": _conv_w(keys[0], 3, 3, 3, 64),
        "conv1_bn": _fold_bn(keys[1], 64),
    }
    in_c = 64
    stage_cfg = [(64, layers[0], 1), (128, layers[1], 2),
                 (256, layers[2], 2), (512, layers[3], 2)]
    stages = []
    for si, (out_c, nb, stride) in enumerate(stage_cfg):
        strides = [stride] + [1] * (nb - 1)
        bkeys = jax.random.split(keys[2 + si], nb)
        blocks = []
        for bi, st in enumerate(strides):
            blocks.append(_make_basic_block(bkeys[bi], in_c, out_c, st))
            in_c = out_c  # BasicBlock.expansion == 1
        stages.append(blocks)
    params["stages"] = stages
    lim = 1.0 / (512 ** 0.5)
    fc_w = jax.random.uniform(keys[6], (512, num_classes), jnp.float32, -lim, lim)
    fc_b = jax.random.uniform(keys[7], (num_classes,), jnp.float32, -lim, lim)
    ncls_pad = ((num_classes + 127) // 128) * 128     # 100 -> 128: lane-dense FC
    params["fc_w"] = jnp.pad(fc_w, ((0, 0), (0, ncls_pad - num_classes)))
    params["fc_b"] = jnp.pad(fc_b, ((0, ncls_pad - num_classes),))
    params["num_classes"] = num_classes
    return params


# --------------------------------- forward -----------------------------------

def resnet_forward(params, x_nchw):
    x = jnp.transpose(x_nchw, (0, 2, 3, 1)).astype(jnp.float32)   # NCHW -> NHWC
    s, b = params["conv1_bn"]
    a, geom = stem_forward(x, params["conv1_w"], s, b)
    for blocks in params["stages"]:
        for p in blocks:
            if p["stride"] == 1:
                a, geom = basic_block_s1(a, p, geom)
            else:
                a, geom = basic_block_s2(a, p, geom)
    n, h, w, c = geom
    hp, wp = h + 2, w + 2
    # Per-image pooling selector (1/(H*W) over each image's rows; pads are 0).
    sel = (jnp.repeat(jnp.eye(n, dtype=jnp.float32), hp * wp, axis=1)
           * (1.0 / (h * w))).astype(jnp.bfloat16)
    ncls_pad = params["fc_w"].shape[1]
    logits = pl.pallas_call(
        _avgpool_fc_kernel,
        out_shape=jax.ShapeDtypeStruct((n, ncls_pad), jnp.float32),
        in_specs=[_VMEM] * 4, out_specs=_VMEM,
        compiler_params=_cp(),
    )(sel, a, params["fc_w"], params["fc_b"].reshape(1, ncls_pad))
    return logits[:, :params["num_classes"]]


# ----------------------------------- main -------------------------------------

if __name__ == "__main__":
    key = jax.random.PRNGKey(0)
    kp, kx = jax.random.split(key)
    params = build_resnet_params(kp, layers=(2, 2, 2, 2), num_classes=100)
    # Small CIFAR-like input: batch=2, 3 channels, 16x16 spatial (NCHW like PyTorch).
    x = jax.random.normal(kx, (2, 3, 16, 16), jnp.float32)
    logits = resnet_forward(params, x)
    jax.block_until_ready(logits)
    assert logits.shape == (2, 100)
    print("KERNEL_OK")
</pallas_src>

<mosaic_0001>
module attributes {stable_mosaic.version = 11 : i64} {
  func.func @_stem_kernel(%arg0: memref<648x32xbf16, #tpu.memory_space<vmem>>, %arg1: memref<32x64xbf16, #tpu.memory_space<vmem>>, %arg2: memref<1x64xf32, #tpu.memory_space<vmem>>, %arg3: memref<1x64xf32, #tpu.memory_space<vmem>>, %arg4: memref<648x1xf32, #tpu.memory_space<vmem>>, %arg5: memref<648x64xbf16, #tpu.memory_space<vmem>>) attributes {dimension_semantics = [], scalar_prefetch = 0 : i64, scratch_operands = 0 : i64, tpu.core_type = #tpu.core_type<tc>} {
    %c0 = arith.constant 0 : index
    %c0_0 = arith.constant 0 : index
    %0 = vector.load %arg0[%c0, %c0_0] : memref<648x32xbf16, #tpu.memory_space<vmem>>, vector<648x32xbf16>
    %c0_1 = arith.constant 0 : index
    %c0_2 = arith.constant 0 : index
    %1 = vector.load %arg1[%c0_1, %c0_2] : memref<32x64xbf16, #tpu.memory_space<vmem>>, vector<32x64xbf16>
    %cst = arith.constant dense<0.000000e+00> : vector<648x64xf32>
    %2 = tpu.matmul %0, %1, %cst {dimension_numbers = #tpu.dot_dimension_numbers<[1], [0], [0], [1], [0, 0, 1, 1], [], []>} : vector<648x32xbf16>, vector<32x64xbf16>, vector<648x64xf32> -> vector<648x64xf32>
    %c0_3 = arith.constant 0 : index
    %c0_4 = arith.constant 0 : index
    %3 = vector.load %arg2[%c0_3, %c0_4] : memref<1x64xf32, #tpu.memory_space<vmem>>, vector<1x64xf32>
    %4 = vector.broadcast %3 : vector<1x64xf32> to vector<648x64xf32>
    %5 = arith.mulf %2, %4 : vector<648x64xf32>
    %c0_5 = arith.constant 0 : index
    %c0_6 = arith.constant 0 : index
    %6 = vector.load %arg3[%c0_5, %c0_6] : memref<1x64xf32, #tpu.memory_space<vmem>>, vector<1x64xf32>
    %7 = vector.broadcast %6 : vector<1x64xf32> to vector<648x64xf32>
    %8 = arith.addf %5, %7 : vector<648x64xf32>
    %cst_7 = arith.constant 0.000000e+00 : f32
    %9 = vector.broadcast %cst_7 : f32 to vector<648x64xf32>
    %10 = arith.maximumf %8, %9 : vector<648x64xf32>
    %c0_8 = arith.constant 0 : index
    %c0_9 = arith.constant 0 : index
    %11 = vector.load %arg4[%c0_8, %c0_9] : memref<648x1xf32, #tpu.memory_space<vmem>>, vector<648x1xf32>
    %12 = vector.broadcast %11 : vector<648x1xf32> to vector<648x64xf32>
    %13 = arith.mulf %10, %12 : vector<648x64xf32>
    %14 = arith.truncf %13 : vector<648x64xf32> to vector<648x64xbf16>
    %c0_10 = arith.constant 0 : index
    %c0_11 = arith.constant 0 : index
    %15 = vector.load %arg5[%c0_10, %c0_11] : memref<648x64xbf16, #tpu.memory_space<vmem>>, vector<648x64xbf16>
    tpu.vector_store %arg5[%c0_10, %c0_11], %14 {strides = array<i32>} : memref<648x64xbf16, #tpu.memory_space<vmem>>, vector<648x64xbf16>,
    return
  }
}

</mosaic_0001>

<llo_original>
// kernel: tpu_custom_call.1
$region0: #{tpu_custom_call.1}
  #allocation0 [shape = 'u32[]', space=smem, size = 0x4, offset = 0x4, fixed_abs, tag = 'smem constant byte address 0x4 - core index']
  #allocation1 [shape = 'u32[144,128]{1,0:T(1,128)}', space=vmem, size = 0x12000, scoped, tag = 'internal scratch']
  %s0 = inlined_call_operand.vmem [shape: bf16[648,32], index: 0, kind: input, shape index: {}]
  %s1 = inlined_call_operand.vmem [shape: bf16[32,64], index: 1, kind: input, shape index: {}]
  %s2 = inlined_call_operand.vmem [shape: f32[1,64], index: 2, kind: input, shape index: {}]
  %s3 = inlined_call_operand.vmem [shape: f32[1,64], index: 3, kind: input, shape index: {}]
  %s4 = inlined_call_operand.vmem [shape: f32[648,1], index: 4, kind: input, shape index: {}]
  %s5 = inlined_call_operand.vmem [shape: bf16[648,64], index: 5, kind: output, shape index: {}]
  %s6 = sld [smem:[#allocation0]]
  $region30: #{tpu_custom_call.1} parent=0
    _
  %s8 = ssub.s32 1, %s6
  %s9 = scalar_select 0, %s8, %s6
  // Predicated region
  $region2: #{tpu_custom_call.1} parent=0 // pred_check
    _
  $region3: #{tpu_custom_call.1} parent=0 // pred_check_branch
    %11 = sbr.rel (0) target = $region5
  $region4: #{tpu_custom_call.1} parent=0 // pred_region
    _
  $region5: #{tpu_custom_call.1} parent=0 // pred_fallthru
    _
  // Predicated region
  $region6: #{tpu_custom_call.1} parent=0 // pred_check
    _
  $region7: #{tpu_custom_call.1} parent=0 // pred_check_branch
    %13 = sbr.rel (0) target = $region9
  $region8: #{tpu_custom_call.1} parent=0 // pred_region
    _
  $region9: #{tpu_custom_call.1} parent=0 // pred_fallthru
    _
  // Predicated region
  $region10: #{tpu_custom_call.1} parent=0 // pred_check
    _
  $region11: #{tpu_custom_call.1} parent=0 // pred_check_branch
    %15 = sbr.rel (0) target = $region13
  $region12: #{tpu_custom_call.1} parent=0 // pred_region
    _
  $region13: #{tpu_custom_call.1} parent=0 // pred_fallthru
    _
  // Predicated region
  $region14: #{tpu_custom_call.1} parent=0 // pred_check
    _
  $region15: #{tpu_custom_call.1} parent=0 // pred_check_branch
    %17 = sbr.rel (0) target = $region17
  $region16: #{tpu_custom_call.1} parent=0 // pred_region
    _
  $region17: #{tpu_custom_call.1} parent=0 // pred_fallthru
    _
  // Predicated region
  $region18: #{tpu_custom_call.1} parent=0 // pred_check
    _
  $region19: #{tpu_custom_call.1} parent=0 // pred_check_branch
    %19 = sbr.rel (0) target = $region21
  $region20: #{tpu_custom_call.1} parent=0 // pred_region
    _
  $region21: #{tpu_custom_call.1} parent=0 // pred_fallthru
    _
  %v21 = vld [vmem:[%s0] sm:$0xf]
  %v22 = vld [vmem:[%s0 + $0x4] sm:$0xf]
  %v23 = vld [vmem:[%s0 + $0x8] sm:$0xf]
  %v24 = vld [vmem:[%s0 + $0xc] sm:$0xf]
  %v25 = vld [vmem:[%s0 + $0x10] sm:$0xf]
  %v26 = vld [vmem:[%s0 + $0x14] sm:$0xf]
  %v27 = vld [vmem:[%s0 + $0x18] sm:$0xf]
  %v28 = vld [vmem:[%s0 + $0x1c] sm:$0xf]
  %v29 = vld [vmem:[%s0 + $0x20] sm:$0xf]
  %v30 = vld [vmem:[%s0 + $0x24] sm:$0xf]
  %v31 = vld [vmem:[%s0 + $0x28] sm:$0xf]
  %v32 = vld [vmem:[%s0 + $0x2c] sm:$0xf]
  %v33 = vld [vmem:[%s0 + $0x30] sm:$0xf]
  %v34 = vld [vmem:[%s0 + $0x34] sm:$0xf]
  %v35 = vld [vmem:[%s0 + $0x38] sm:$0xf]
  %v36 = vld [vmem:[%s0 + $0x3c] sm:$0xf]
  %v37 = vld [vmem:[%s0 + $0x40] sm:$0xf]
  %v38 = vld [vmem:[%s0 + $0x44] sm:$0xf]
  %v39 = vld [vmem:[%s0 + $0x48] sm:$0xf]
  %v40 = vld [vmem:[%s0 + $0x4c] sm:$0xf]
  %v41 = vld [vmem:[%s0 + $0x50] sm:$0xf]
  %v42 = vld [vmem:[%s0 + $0x54] sm:$0xf]
  %v43 = vld [vmem:[%s0 + $0x58] sm:$0xf]
  %v44 = vld [vmem:[%s0 + $0x5c] sm:$0xf]
  %v45 = vld [vmem:[%s0 + $0x60] sm:$0xf]
  %v46 = vld [vmem:[%s0 + $0x64] sm:$0xf]
  %v47 = vld [vmem:[%s0 + $0x68] sm:$0xf]
  %v48 = vld [vmem:[%s0 + $0x6c] sm:$0xf]
  %v49 = vld [vmem:[%s0 + $0x70] sm:$0xf]
  %v50 = vld [vmem:[%s0 + $0x74] sm:$0xf]
  %v51 = vld [vmem:[%s0 + $0x78] sm:$0xf]
  %v52 = vld [vmem:[%s0 + $0x7c] sm:$0xf]
  %v53 = vld [vmem:[%s0 + $0x80] sm:$0xf]
  %v54 = vld [vmem:[%s0 + $0x84] sm:$0xf]
  %v55 = vld [vmem:[%s0 + $0x88] sm:$0xf]
  %v56 = vld [vmem:[%s0 + $0x8c] sm:$0xf]
  %v57 = vld [vmem:[%s0 + $0x90] sm:$0xf]
  %v58 = vld [vmem:[%s0 + $0x94] sm:$0xf]
  %v59 = vld [vmem:[%s0 + $0x98] sm:$0xf]
  %v60 = vld [vmem:[%s0 + $0x9c] sm:$0xf]
  %v61 = vld [vmem:[%s0 + $0xa0] sm:$0xf]
  %v62 = vld [vmem:[%s0 + $0xa4] sm:$0xf]
  %v63 = vld [vmem:[%s0 + $0xa8] sm:$0xf]
  %v64 = vld [vmem:[%s0 + $0xac] sm:$0xf]
  %v65 = vld [vmem:[%s0 + $0xb0] sm:$0xf]
  %v66 = vld [vmem:[%s0 + $0xb4] sm:$0xf]
  %v67 = vld [vmem:[%s0 + $0xb8] sm:$0xf]
  %v68 = vld [vmem:[%s0 + $0xbc] sm:$0xf]
  %v69 = vld [vmem:[%s0 + $0xc0] sm:$0xf]
  %v70 = vld [vmem:[%s0 + $0xc4] sm:$0xf]
  %v71 = vld [vmem:[%s0 + $0xc8] sm:$0xf]
  %v72 = vld [vmem:[%s0 + $0xcc] sm:$0xf]
  %v73 = vld [vmem:[%s0 + $0xd0] sm:$0xf]
  %v74 = vld [vmem:[%s0 + $0xd4] sm:$0xf]
  %v75 = vld [vmem:[%s0 + $0xd8] sm:$0xf]
  %v76 = vld [vmem:[%s0 + $0xdc] sm:$0xf]
  %v77 = vld [vmem:[%s0 + $0xe0] sm:$0xf]
  %v78 = vld [vmem:[%s0 + $0xe4] sm:$0xf]
  %v79 = vld [vmem:[%s0 + $0xe8] sm:$0xf]
  %v80 = vld [vmem:[%s0 + $0xec] sm:$0xf]
  %v81 = vld [vmem:[%s0 + $0xf0] sm:$0xf]
  %v82 = vld [vmem:[%s0 + $0xf4] sm:$0xf]
  %v83 = vld [vmem:[%s0 + $0xf8] sm:$0xf]
  %v84 = vld [vmem:[%s0 + $0xfc] sm:$0xf]
  %v85 = vld [vmem:[%s0 + $0x100] sm:$0xf]
  %v86 = vld [vmem:[%s0 + $0x104] sm:$0xf]
  %v87 = vld [vmem:[%s0 + $0x108] sm:$0xf]
  %v88 = vld [vmem:[%s0 + $0x10c] sm:$0xf]
  %v89 = vld [vmem:[%s0 + $0x110] sm:$0xf]
  %v90 = vld [vmem:[%s0 + $0x114] sm:$0xf]
  %v91 = vld [vmem:[%s0 + $0x118] sm:$0xf]
  %v92 = vld [vmem:[%s0 + $0x11c] sm:$0xf]
  %v93 = vld [vmem:[%s0 + $0x120] sm:$0xf]
  %v94 = vld [vmem:[%s0 + $0x124] sm:$0xf]
  %v95 = vld [vmem:[%s0 + $0x128] sm:$0xf]
  %v96 = vld [vmem:[%s0 + $0x12c] sm:$0xf]
  %v97 = vld [vmem:[%s0 + $0x130] sm:$0xf]
  %v98 = vld [vmem:[%s0 + $0x134] sm:$0xf]
  %v99 = vld [vmem:[%s0 + $0x138] sm:$0xf]
  %v100 = vld [vmem:[%s0 + $0x13c] sm:$0xf]
  %v101 = vld [vmem:[%s0 + $0x140] sm:$0xf]
  %v102 = vld [vmem:[%s1] sm:$0xf]
  %v103 = vld [vmem:[%s1 + $0x4] sm:$0xf]
  %v104 = vld [vmem:[%s1 + $0x8] sm:$0xf]
  %v105 = vld [vmem:[%s1 + $0xc] sm:$0xf]
  %v187 = vunpack.c.l.b16 %v21
  %v188 = vunpack.c.l.b16 %v22
  %v189 = vunpack.c.l.b16 %v23
  %v190 = vunpack.c.l.b16 %v24
  %v191 = vunpack.c.l.b16 %v25
  %v192 = vunpack.c.l.b16 %v26
  %v193 = vunpack.c.l.b16 %v27
  %v194 = vunpack.c.l.b16 %v28
  %v195 = vunpack.c.l.b16 %v29
  %v196 = vunpack.c.l.b16 %v30
  %v197 = vunpack.c.l.b16 %v31
  %v198 = vunpack.c.l.b16 %v32
  %v199 = vunpack.c.l.b16 %v33
  %v200 = vunpack.c.l.b16 %v34
  %v201 = vunpack.c.l.b16 %v35
  %v202 = vunpack.c.l.b16 %v36
  %v203 = vunpack.c.l.b16 %v37
  %v204 = vunpack.c.l.b16 %v38
  %v205 = vunpack.c.l.b16 %v39
  %v206 = vunpack.c.l.b16 %v40
  %v207 = vunpack.c.l.b16 %v41
  %v208 = vunpack.c.l.b16 %v42
  %v209 = vunpack.c.l.b16 %v43
  %v210 = vunpack.c.l.b16 %v44
  %v211 = vunpack.c.l.b16 %v45
  %v212 = vunpack.c.l.b16 %v46
  %v213 = vunpack.c.l.b16 %v47
  %v214 = vunpack.c.l.b16 %v48
  %v215 = vunpack.c.l.b16 %v49
  %v216 = vunpack.c.l.b16 %v50
  %v217 = vunpack.c.l.b16 %v51
  %v218 = vunpack.c.l.b16 %v52
  %v219 = vunpack.c.l.b16 %v53
  %v220 = vunpack.c.l.b16 %v54
  %v221 = vunpack.c.l.b16 %v55
  %v222 = vunpack.c.l.b16 %v56
  %v223 = vunpack.c.l.b16 %v57
  %v224 = vunpack.c.l.b16 %v58
  %v225 = vunpack.c.l.b16 %v59
  %v226 = vunpack.c.l.b16 %v60
  %v227 = vunpack.c.l.b16 %v61
  %v228 = vunpack.c.l.b16 %v62
  %v229 = vunpack.c.l.b16 %v63
  %v230 = vunpack.c.l.b16 %v64
  %v231 = vunpack.c.l.b16 %v65
  %v232 = vunpack.c.l.b16 %v66
  %v233 = vunpack.c.l.b16 %v67
  %v234 = vunpack.c.l.b16 %v68
  %v235 = vunpack.c.l.b16 %v69
  %v236 = vunpack.c.l.b16 %v70
  %v237 = vunpack.c.l.b16 %v71
  %v238 = vunpack.c.l.b16 %v72
  %v239 = vunpack.c.l.b16 %v73
  %v240 = vunpack.c.l.b16 %v74
  %v241 = vunpack.c.l.b16 %v75
  %v242 = vunpack.c.l.b16 %v76
  %v243 = vunpack.c.l.b16 %v77
  %v244 = vunpack.c.l.b16 %v78
  %v245 = vunpack.c.l.b16 %v79
  %v246 = vunpack.c.l.b16 %v80
  %v247 = vunpack.c.l.b16 %v81
  %v248 = vunpack.c.l.b16 %v82
  %v249 = vunpack.c.l.b16 %v83
  %v250 = vunpack.c.l.b16 %v84
  %v251 = vunpack.c.l.b16 %v85
  %v252 = vunpack.c.l.b16 %v86
  %v253 = vunpack.c.l.b16 %v87
  %v254 = vunpack.c.l.b16 %v88
  %v255 = vunpack.c.l.b16 %v89
  %v256 = vunpack.c.l.b16 %v90
  %v257 = vunpack.c.l.b16 %v91
  %v258 = vunpack.c.l.b16 %v92
  %v259 = vunpack.c.l.b16 %v93
  %v260 = vunpack.c.l.b16 %v94
  %v261 = vunpack.c.l.b16 %v95
  %v262 = vunpack.c.l.b16 %v96
  %v263 = vunpack.c.l.b16 %v97
  %v264 = vunpack.c.l.b16 %v98
  %v265 = vunpack.c.l.b16 %v99
  %v266 = vunpack.c.l.b16 %v100
  %v267 = vunpack.c.l.b16 %v101
  %v268 = vpack.c.b16 %v188, %v187
  %v269 = vpack.c.b16 %v190, %v189
  %v270 = vpack.c.b16 %v192, %v191
  %v271 = vpack.c.b16 %v194, %v193
  %v272 = vpack.c.b16 %v196, %v195
  %v273 = vpack.c.b16 %v198, %v197
  %v274 = vpack.c.b16 %v200, %v199
  %v275 = vpack.c.b16 %v202, %v201
  %v276 = vpack.c.b16 %v204, %v203
  %v277 = vpack.c.b16 %v206, %v205
  %v278 = vpack.c.b16 %v208, %v207
  %v279 = vpack.c.b16 %v210, %v209
  %v280 = vpack.c.b16 %v212, %v211
  %v281 = vpack.c.b16 %v214, %v213
  %v282 = vpack.c.b16 %v216, %v215
  %v283 = vpack.c.b16 %v218, %v217
  %v284 = vpack.c.b16 %v220, %v219
  %v285 = vpack.c.b16 %v222, %v221
  %v286 = vpack.c.b16 %v224, %v223
  %v287 = vpack.c.b16 %v226, %v225
  %v288 = vpack.c.b16 %v228, %v227
  %v289 = vpack.c.b16 %v230, %v229
  %v290 = vpack.c.b16 %v232, %v231
  %v291 = vpack.c.b16 %v234, %v233
  %v292 = vpack.c.b16 %v236, %v235
  %v293 = vpack.c.b16 %v238, %v237
  %v294 = vpack.c.b16 %v240, %v239
  %v295 = vpack.c.b16 %v242, %v241
  %v296 = vpack.c.b16 %v244, %v243
  %v297 = vpack.c.b16 %v246, %v245
  %v298 = vpack.c.b16 %v248, %v247
  %v299 = vpack.c.b16 %v250, %v249
  %v300 = vpack.c.b16 %v252, %v251
  %v301 = vpack.c.b16 %v254, %v253
  %v302 = vpack.c.b16 %v256, %v255
  %v303 = vpack.c.b16 %v258, %v257
  %v304 = vpack.c.b16 %v260, %v259
  %v305 = vpack.c.b16 %v262, %v261
  %v306 = vpack.c.b16 %v264, %v263
  %v307 = vpack.c.b16 %v266, %v265
  %v308 = vpack.c.b16 %v267, %v267
  %v313 = vunpack.c.l.b16 %v102
  %v314 = vunpack.c.l.b16 %v103
  %v315 = vunpack.c.l.b16 %v104
  %v316 = vunpack.c.l.b16 %v105
  %v317 = vpack.c.b16 %v314, %v313
  %v318 = vpack.c.b16 %v316, %v315
  %vm321 = vcmask 261120
  %v323 = vsel %vm321, %v268, 0
  %v326 = vsel %vm321, %v269, 0
  %v329 = vsel %vm321, %v270, 0
  %v332 = vsel %vm321, %v271, 0
  %v335 = vsel %vm321, %v272, 0
  %v338 = vsel %vm321, %v273, 0
  %v341 = vsel %vm321, %v274, 0
  %v344 = vsel %vm321, %v275, 0
  %v347 = vsel %vm321, %v276, 0
  %v350 = vsel %vm321, %v277, 0
  %v353 = vsel %vm321, %v278, 0
  %v356 = vsel %vm321, %v279, 0
  %v359 = vsel %vm321, %v280, 0
  %v362 = vsel %vm321, %v281, 0
  %v365 = vsel %vm321, %v282, 0
  %v368 = vsel %vm321, %v283, 0
  %v371 = vsel %vm321, %v284, 0
  %v374 = vsel %vm321, %v285, 0
  %v377 = vsel %vm321, %v286, 0
  %v380 = vsel %vm321, %v287, 0
  %v383 = vsel %vm321, %v288, 0
  %v386 = vsel %vm321, %v289, 0
  %v389 = vsel %vm321, %v290, 0
  %v392 = vsel %vm321, %v291, 0
  %v395 = vsel %vm321, %v292, 0
  %v398 = vsel %vm321, %v293, 0
  %v401 = vsel %vm321, %v294, 0
  %v404 = vsel %vm321, %v295, 0
  %v407 = vsel %vm321, %v296, 0
  %v410 = vsel %vm321, %v297, 0
  %v413 = vsel %vm321, %v298, 0
  %v416 = vsel %vm321, %v299, 0
  %v419 = vsel %vm321, %v300, 0
  %v422 = vsel %vm321, %v301, 0
  %v425 = vsel %vm321, %v302, 0
  %v428 = vsel %vm321, %v303, 0
  %v431 = vsel %vm321, %v304, 0
  %v434 = vsel %vm321, %v305, 0
  %v437 = vsel %vm321, %v306, 0
  %v440 = vsel %vm321, %v307, 0
  %v443 = vsel %vm321, %v308, 0
  %445 = vmatprep.subr.bf16.mxu0 0
  %446 = vmatpush1.bf16.msra.mxu0 %v317
  %447 = vmatprep.subr.bf16.mxu0 0
  %448 = vmatpush1.bf16.msra.mxu0 %v318
  %449 = vmatprep.subr.bf16.mxu0 0
  %450 = vmatpush1.bf16.msra.mxu0 0
  %451 = vmatprep.subr.bf16.mxu0 0
  %452 = vmatpush1.bf16.msra.mxu0 0
  %453 = vmatprep.subr.bf16.mxu0 0
  %454 = vmatpush1.bf16.msra.mxu0 0
  %455 = vmatprep.subr.bf16.mxu0 0
  %456 = vmatpush1.bf16.msra.mxu0 0
  %457 = vmatprep.subr.bf16.mxu0 0
  %458 = vmatpush1.bf16.msra.mxu0 0
  %459 = vmatprep.subr.bf16.mxu0 0
  %460 = vmatpush1.bf16.msra.mxu0 0
  %461 = vmatprep.subr.bf16.mxu0 0
  %462 = vmatpush1.bf16.msra.mxu0 0
  %463 = vmatprep.subr.bf16.mxu0 0
  %464 = vmatpush1.bf16.msra.mxu0 0
  %465 = vmatprep.subr.bf16.mxu0 0
  %466 = vmatpush1.bf16.msra.mxu0 0
  %467 = vmatprep.subr.bf16.mxu0 0
  %468 = vmatpush1.bf16.msra.mxu0 0
  %469 = vmatprep.subr.bf16.mxu0 0
  %470 = vmatpush1.bf16.msra.mxu0 0
  %471 = vmatprep.subr.bf16.mxu0 0
  %472 = vmatpush1.bf16.msra.mxu0 0
  %473 = vmatprep.subr.bf16.mxu0 0
  %474 = vmatpush1.bf16.msra.mxu0 0
  %475 = vmatprep.subr.bf16.mxu0 0
  %476 = vmatpush1.bf16.msra.mxu0 0
  %477 = vmatprep.mubr.bf16.mxu0 0
  %478 = vmatmul.mubr.bf16.gmra.mrb[0].mxu0 %v323
  %v479 = vpop.f32.mrb[0].mxu0
  %v480 = vadd.f32 0.0, %v479
  %v481 = vpop.f32.mrb[0].mxu0
  %v482 = vpop.f32.mrb[0].mxu0
  %v483 = vadd.f32 0.0, %v482
  %v484 = vpop.f32.mrb[0].mxu0
  %485 = vmatprep.mubr.bf16.mxu0 0
  %486 = vmatmul.mubr.bf16.gmra.mrb[0].mxu0 %v326
  %v487 = vpop.f32.mrb[0].mxu0
  %v488 = vadd.f32 0.0, %v487
  %v489 = vpop.f32.mrb[0].mxu0
  %v490 = vpop.f32.mrb[0].mxu0
  %v491 = vadd.f32 0.0, %v490
  %v492 = vpop.f32.mrb[0].mxu0
  %493 = vmatprep.mubr.bf16.mxu0 0
  %494 = vmatmul.mubr.bf16.gmra.mrb[0].mxu0 %v329
  %v495 = vpop.f32.mrb[0].mxu0
  %v496 = vadd.f32 0.0, %v495
  %v497 = vpop.f32.mrb[0].mxu0
  %v498 = vpop.f32.mrb[0].mxu0
  %v499 = vadd.f32 0.0, %v498
  %v500 = vpop.f32.mrb[0].mxu0
  %501 = vmatprep.mubr.bf16.mxu0 0
  %502 = vmatmul.mubr.bf16.gmra.mrb[0].mxu0 %v332
  %v503 = vpop.f32.mrb[0].mxu0
  %v504 = vadd.f32 0.0, %v503
  %v505 = vpop.f32.mrb[0].mxu0
  %v506 = vpop.f32.mrb[0].mxu0
  %v507 = vadd.f32 0.0, %v506
  %v508 = vpop.f32.mrb[0].mxu0
  %509 = vmatprep.mubr.bf16.mxu0 0
  %510 = vmatmul.mubr.bf16.gmra.mrb[0].mxu0 %v335
  %v511 = vpop.f32.mrb[0].mxu0
  %v512 = vadd.f32 0.0, %v511
  %v513 = vpop.f32.mrb[0].mxu0
  %v514 = vpop.f32.mrb[0].mxu0
  %v515 = vadd.f32 0.0, %v514
  %v516 = vpop.f32.mrb[0].mxu0
  %517 = vmatprep.mubr.bf16.mxu0 0
  %518 = vmatmul.mubr.bf16.gmra.mrb[0].mxu0 %v338
  %v519 = vpop.f32.mrb[0].mxu0
  %v520 = vadd.f32 0.0, %v519
  %v521 = vpop.f32.mrb[0].mxu0
  %v522 = vpop.f32.mrb[0].mxu0
  %v523 = vadd.f32 0.0, %v522
  %v524 = vpop.f32.mrb[0].mxu0
  %525 = vmatprep.mubr.bf16.mxu0 0
  %526 = vmatmul.mubr.bf16.gmra.mrb[0].mxu0 %v341
  %v527 = vpop.f32.mrb[0].mxu0
  %v528 = vadd.f32 0.0, %v527
  %v529 = vpop.f32.mrb[0].mxu0
  %v530 = vpop.f32.mrb[0].mxu0
  %v531 = vadd.f32 0.0, %v530
  %v532 = vpop.f32.mrb[0].mxu0
  %533 = vmatprep.mubr.bf16.mxu0 0
  %534 = vmatmul.mubr.bf16.gmra.mrb[0].mxu0 %v344
  %v535 = vpop.f32.mrb[0].mxu0
  %v536 = vadd.f32 0.0, %v535
  %v537 = vpop.f32.mrb[0].mxu0
  %v538 = vpop.f32.mrb[0].mxu0
  %v539 = vadd.f32 0.0, %v538
  %v540 = vpop.f32.mrb[0].mxu0
  %541 = vmatprep.mubr.bf16.mxu0 0
  %542 = vmatmul.mubr.bf16.gmra.mrb[0].mxu0 %v347
  %v543 = vpop.f32.mrb[0].mxu0
  %v544 = vadd.f32 0.0, %v543
  %v545 = vpop.f32.mrb[0].mxu0
  %v546 = vpop.f32.mrb[0].mxu0
  %v547 = vadd.f32 0.0, %v546
  %v548 = vpop.f32.mrb[0].mxu0
  %549 = vmatprep.mubr.bf16.mxu0 0
  %550 = vmatmul.mubr.bf16.gmra.mrb[0].mxu0 %v350
  %v551 = vpop.f32.mrb[0].mxu0
  %v552 = vadd.f32 0.0, %v551
  %v553 = vpop.f32.mrb[0].mxu0
  %v554 = vpop.f32.mrb[0].mxu0
  %v555 = vadd.f32 0.0, %v554
  %v556 = vpop.f32.mrb[0].mxu0
  %557 = vmatprep.mubr.bf16.mxu0 0
  %558 = vmatmul.mubr.bf16.gmra.mrb[0].mxu0 %v353
  %v559 = vpop.f32.mrb[0].mxu0
  %v560 = vadd.f32 0.0, %v559
  %v561 = vpop.f32.mrb[0].mxu0
  %v562 = vpop.f32.mrb[0].mxu0
  %v563 = vadd.f32 0.0, %v562
  %v564 = vpop.f32.mrb[0].mxu0
  %565 = vmatprep.mubr.bf16.mxu0 0
  %566 = vmatmul.mubr.bf16.gmra.mrb[0].mxu0 %v356
  %v567 = vpop.f32.mrb[0].mxu0
  %v568 = vadd.f32 0.0, %v567
  %v569 = vpop.f32.mrb[0].mxu0
  %v570 = vpop.f32.mrb[0].mxu0
  %v571 = vadd.f32 0.0, %v570
  %v572 = vpop.f32.mrb[0].mxu0
  %573 = vmatprep.mubr.bf16.mxu0 0
  %574 = vmatmul.mubr.bf16.gmra.mrb[0].mxu0 %v359
  %v575 = vpop.f32.mrb[0].mxu0
  %v576 = vadd.f32 0.0, %v575
  %v577 = vpop.f32.mrb[0].mxu0
  %v578 = vpop.f32.mrb[0].mxu0
  %v579 = vadd.f32 0.0, %v578
  %v580 = vpop.f32.mrb[0].mxu0
  %581 = vmatprep.mubr.bf16.mxu0 0
  %582 = vmatmul.mubr.bf16.gmra.mrb[0].mxu0 %v362
  %v583 = vpop.f32.mrb[0].mxu0
  %v584 = vadd.f32 0.0, %v583
  %v585 = vpop.f32.mrb[0].mxu0
  %v586 = vpop.f32.mrb[0].mxu0
  %v587 = vadd.f32 0.0, %v586
  %v588 = vpop.f32.mrb[0].mxu0
  %589 = vmatprep.mubr.bf16.mxu0 0
  %590 = vmatmul.mubr.bf16.gmra.mrb[0].mxu0 %v365
  %v591 = vpop.f32.mrb[0].mxu0
  %v592 = vadd.f32 0.0, %v591
  %v593 = vpop.f32.mrb[0].mxu0
  %v594 = vpop.f32.mrb[0].mxu0
  %v595 = vadd.f32 0.0, %v594
  %v596 = vpop.f32.mrb[0].mxu0
  %597 = vmatprep.mubr.bf16.mxu0 0
  %598 = vmatmul.mubr.bf16.gmra.mrb[0].mxu0 %v368
  %v599 = vpop.f32.mrb[0].mxu0
  %v600 = vadd.f32 0.0, %v599
  %v601 = vpop.f32.mrb[0].mxu0
  %v602 = vpop.f32.mrb[0].mxu0
  %v603 = vadd.f32 0.0, %v602
  %v604 = vpop.f32.mrb[0].mxu0
  %605 = vmatprep.mubr.bf16.mxu0 0
  %606 = vmatmul.mubr.bf16.gmra.mrb[0].mxu0 %v371
  %v607 = vpop.f32.mrb[0].mxu0
  %v608 = vadd.f32 0.0, %v607
  %v609 = vpop.f32.mrb[0].mxu0
  %v610 = vpop.f32.mrb[0].mxu0
  %v611 = vadd.f32 0.0, %v610
  %v612 = vpop.f32.mrb[0].mxu0
  %613 = vmatprep.mubr.bf16.mxu0 0
  %614 = vmatmul.mubr.bf16.gmra.mrb[0].mxu0 %v374
  %v615 = vpop.f32.mrb[0].mxu0
  %v616 = vadd.f32 0.0, %v615
  %v617 = vpop.f32.mrb[0].mxu0
  %v618 = vpop.f32.mrb[0].mxu0
  %v619 = vadd.f32 0.0, %v618
  %v620 = vpop.f32.mrb[0].mxu0
  %621 = vmatprep.mubr.bf16.mxu0 0
  %622 = vmatmul.mubr.bf16.gmra.mrb[0].mxu0 %v377
  %v623 = vpop.f32.mrb[0].mxu0
  %v624 = vadd.f32 0.0, %v623
  %v625 = vpop.f32.mrb[0].mxu0
  %v626 = vpop.f32.mrb[0].mxu0
  %v627 = vadd.f32 0.0, %v626
  %v628 = vpop.f32.mrb[0].mxu0
  %629 = vmatprep.mubr.bf16.mxu0 0
  %630 = vmatmul.mubr.bf16.gmra.mrb[0].mxu0 %v380
  %v631 = vpop.f32.mrb[0].mxu0
  %v632 = vadd.f32 0.0, %v631
  %v633 = vpop.f32.mrb[0].mxu0
  %v634 = vpop.f32.mrb[0].mxu0
  %v635 = vadd.f32 0.0, %v634
  %v636 = vpop.f32.mrb[0].mxu0
  %637 = vmatprep.mubr.bf16.mxu0 0
  %638 = vmatmul.mubr.bf16.gmra.mrb[0].mxu0 %v383
  %v639 = vpop.f32.mrb[0].mxu0
  %v640 = vadd.f32 0.0, %v639
  %v641 = vpop.f32.mrb[0].mxu0
  %v642 = vpop.f32.mrb[0].mxu0
  %v643 = vadd.f32 0.0, %v642
  %v644 = vpop.f32.mrb[0].mxu0
  %645 = vmatprep.mubr.bf16.mxu0 0
  %646 = vmatmul.mubr.bf16.gmra.mrb[0].mxu0 %v386
  %v647 = vpop.f32.mrb[0].mxu0
  %v648 = vadd.f32 0.0, %v647
  %v649 = vpop.f32.mrb[0].mxu0
  %v650 = vpop.f32.mrb[0].mxu0
  %v651 = vadd.f32 0.0, %v650
  %v652 = vpop.f32.mrb[0].mxu0
  %653 = vmatprep.mubr.bf16.mxu0 0
  %654 = vmatmul.mubr.bf16.gmra.mrb[0].mxu0 %v389
  %v655 = vpop.f32.mrb[0].mxu0
  %v656 = vadd.f32 0.0, %v655
  %v657 = vpop.f32.mrb[0].mxu0
  %v658 = vpop.f32.mrb[0].mxu0
  %v659 = vadd.f32 0.0, %v658
  %v660 = vpop.f32.mrb[0].mxu0
  %661 = vmatprep.mubr.bf16.mxu0 0
  %662 = vmatmul.mubr.bf16.gmra.mrb[0].mxu0 %v392
  %v663 = vpop.f32.mrb[0].mxu0
  %v664 = vadd.f32 0.0, %v663
  %v665 = vpop.f32.mrb[0].mxu0
  %v666 = vpop.f32.mrb[0].mxu0
  %v667 = vadd.f32 0.0, %v666
  %v668 = vpop.f32.mrb[0].mxu0
  %669 = vmatprep.mubr.bf16.mxu0 0
  %670 = vmatmul.mubr.bf16.gmra.mrb[0].mxu0 %v395
  %v671 = vpop.f32.mrb[0].mxu0
  %v672 = vadd.f32 0.0, %v671
  %v673 = vpop.f32.mrb[0].mxu0
  %v674 = vpop.f32.mrb[0].mxu0
  %v675 = vadd.f32 0.0, %v674
  %v676 = vpop.f32.mrb[0].mxu0
  %677 = vmatprep.mubr.bf16.mxu0 0
  %678 = vmatmul.mubr.bf16.gmra.mrb[0].mxu0 %v398
  %v679 = vpop.f32.mrb[0].mxu0
  %v680 = vadd.f32 0.0, %v679
  %v681 = vpop.f32.mrb[0].mxu0
  %v682 = vpop.f32.mrb[0].mxu0
  %v683 = vadd.f32 0.0, %v682
  %v684 = vpop.f32.mrb[0].mxu0
  %685 = vmatprep.mubr.bf16.mxu0 0
  %686 = vmatmul.mubr.bf16.gmra.mrb[0].mxu0 %v401
  %v687 = vpop.f32.mrb[0].mxu0
  %v688 = vadd.f32 0.0, %v687
  %v689 = vpop.f32.mrb[0].mxu0
  %v690 = vpop.f32.mrb[0].mxu0
  %v691 = vadd.f32 0.0, %v690
  %v692 = vpop.f32.mrb[0].mxu0
  %693 = vmatprep.mubr.bf16.mxu0 0
  %694 = vmatmul.mubr.bf16.gmra.mrb[0].mxu0 %v404
  %v695 = vpop.f32.mrb[0].mxu0
  %v696 = vadd.f32 0.0, %v695
  %v697 = vpop.f32.mrb[0].mxu0
  %v698 = vpop.f32.mrb[0].mxu0
  %v699 = vadd.f32 0.0, %v698
  %v700 = vpop.f32.mrb[0].mxu0
  %701 = vmatprep.mubr.bf16.mxu0 0
  %702 = vmatmul.mubr.bf16.gmra.mrb[0].mxu0 %v407
  %v703 = vpop.f32.mrb[0].mxu0
  %v704 = vadd.f32 0.0, %v703
  %v705 = vpop.f32.mrb[0].mxu0
  %v706 = vpop.f32.mrb[0].mxu0
  %v707 = vadd.f32 0.0, %v706
  %v708 = vpop.f32.mrb[0].mxu0
  %709 = vmatprep.mubr.bf16.mxu0 0
  %710 = vmatmul.mubr.bf16.gmra.mrb[0].mxu0 %v410
  %v711 = vpop.f32.mrb[0].mxu0
  %v712 = vadd.f32 0.0, %v711
  %v713 = vpop.f32.mrb[0].mxu0
  %v714 = vpop.f32.mrb[0].mxu0
  %v715 = vadd.f32 0.0, %v714
  %v716 = vpop.f32.mrb[0].mxu0
  %717 = vmatprep.mubr.bf16.mxu0 0
  %718 = vmatmul.mubr.bf16.gmra.mrb[0].mxu0 %v413
  %v719 = vpop.f32.mrb[0].mxu0
  %v720 = vadd.f32 0.0, %v719
  %v721 = vpop.f32.mrb[0].mxu0
  %v722 = vpop.f32.mrb[0].mxu0
  %v723 = vadd.f32 0.0, %v722
  %v724 = vpop.f32.mrb[0].mxu0
  %725 = vmatprep.mubr.bf16.mxu0 0
  %726 = vmatmul.mubr.bf16.gmra.mrb[0].mxu0 %v416
  %v727 = vpop.f32.mrb[0].mxu0
  %v728 = vadd.f32 0.0, %v727
  %v729 = vpop.f32.mrb[0].mxu0
  %v730 = vpop.f32.mrb[0].mxu0
  %v731 = vadd.f32 0.0, %v730
  %v732 = vpop.f32.mrb[0].mxu0
  %733 = vmatprep.mubr.bf16.mxu0 0
  %734 = vmatmul.mubr.bf16.gmra.mrb[0].mxu0 %v419
  %v735 = vpop.f32.mrb[0].mxu0
  %v736 = vadd.f32 0.0, %v735
  %v737 = vpop.f32.mrb[0].mxu0
  %v738 = vpop.f32.mrb[0].mxu0
  %v739 = vadd.f32 0.0, %v738
  %v740 = vpop.f32.mrb[0].mxu0
  %741 = vmatprep.mubr.bf16.mxu0 0
  %742 = vmatmul.mubr.bf16.gmra.mrb[0].mxu0 %v422
  %v743 = vpop.f32.mrb[0].mxu0
  %v744 = vadd.f32 0.0, %v743
  %v745 = vpop.f32.mrb[0].mxu0
  %v746 = vpop.f32.mrb[0].mxu0
  %v747 = vadd.f32 0.0, %v746
  %v748 = vpop.f32.mrb[0].mxu0
  %749 = vmatprep.mubr.bf16.mxu0 0
  %750 = vmatmul.mubr.bf16.gmra.mrb[0].mxu0 %v425
  %v751 = vpop.f32.mrb[0].mxu0
  %v752 = vadd.f32 0.0, %v751
  %v753 = vpop.f32.mrb[0].mxu0
  %v754 = vpop.f32.mrb[0].mxu0
  %v755 = vadd.f32 0.0, %v754
  %v756 = vpop.f32.mrb[0].mxu0
  %757 = vmatprep.mubr.bf16.mxu0 0
  %758 = vmatmul.mubr.bf16.gmra.mrb[0].mxu0 %v428
  %v759 = vpop.f32.mrb[0].mxu0
  %v760 = vadd.f32 0.0, %v759
  %v761 = vpop.f32.mrb[0].mxu0
  %v762 = vpop.f32.mrb[0].mxu0
  %v763 = vadd.f32 0.0, %v762
  %v764 = vpop.f32.mrb[0].mxu0
  %765 = vmatprep.mubr.bf16.mxu0 0
  %766 = vmatmul.mubr.bf16.gmra.mrb[0].mxu0 %v431
  %v767 = vpop.f32.mrb[0].mxu0
  %v768 = vadd.f32 0.0, %v767
  %v769 = vpop.f32.mrb[0].mxu0
  %v770 = vpop.f32.mrb[0].mxu0
  %v771 = vadd.f32 0.0, %v770
  %v772 = vpop.f32.mrb[0].mxu0
  %773 = vmatprep.mubr.bf16.mxu0 0
  %774 = vmatmul.mubr.bf16.gmra.mrb[0].mxu0 %v434
  %v775 = vpop.f32.mrb[0].mxu0
  %v776 = vadd.f32 0.0, %v775
  %v777 = vpop.f32.mrb[0].mxu0
  %v778 = vpop.f32.mrb[0].mxu0
  %v779 = vadd.f32 0.0, %v778
  %v780 = vpop.f32.mrb[0].mxu0
  %781 = vmatprep.mubr.bf16.mxu0 0
  %782 = vmatmul.mubr.bf16.gmra.mrb[0].mxu0 %v437
  %v783 = vpop.f32.mrb[0].mxu0
  %v784 = vadd.f32 0.0, %v783
  %v785 = vpop.f32.mrb[0].mxu0
  %v786 = vpop.f32.mrb[0].mxu0
  %v787 = vadd.f32 0.0, %v786
  %v788 = vpop.f32.mrb[0].mxu0
  %789 = vmatprep.mubr.bf16.mxu0 0
  %790 = vmatmul.mubr.bf16.gmra.mrb[0].mxu0 %v440
  %v791 = vpop.f32.mrb[0].mxu0
  %v792 = vadd.f32 0.0, %v791
  %v793 = vpop.f32.mrb[0].mxu0
  %v794 = vpop.f32.mrb[0].mxu0
  %v795 = vadd.f32 0.0, %v794
  %v796 = vpop.f32.mrb[0].mxu0
  %797 = vmatprep.mubr.bf16.mxu0 0
  %798 = vmatmul.mubr.bf16.gmra.mrb[0].mxu0 %v443
  %v799 = vpop.f32.mrb[0].mxu0
  %v800 = vadd.f32 0.0, %v799
  %v801 = vpop.f32.mrb[0].mxu0
  %v802 = vpop.f32.mrb[0].mxu0
  %v803 = vpop.f32.mrb[0].mxu0
  %804 = vdwg.mxu0
  %v805 = vld [vmem:[%s2] sm:$0x1]
  %v807 = vlaneseq
  %v808 = vshrl.u32 %v807, 7
  %v809 = vsub.s32 0, %v808
  %v810 = vrot.slane %v805, %v809
  %v812 = vmul.f32 %v480, %v810
  %v813 = vmul.f32 %v483, %v810
  %v814 = vmul.f32 %v488, %v810
  %v815 = vmul.f32 %v491, %v810
  %v816 = vmul.f32 %v496, %v810
  %v817 = vmul.f32 %v499, %v810
  %v818 = vmul.f32 %v504, %v810
  %v819 = vmul.f32 %v507, %v810
  %v820 = vmul.f32 %v512, %v810
  %v821 = vmul.f32 %v515, %v810
  %v822 = vmul.f32 %v520, %v810
  %v823 = vmul.f32 %v523, %v810
  %v824 = vmul.f32 %v528, %v810
  %v825 = vmul.f32 %v531, %v810
  %v826 = vmul.f32 %v536, %v810
  %v827 = vmul.f32 %v539, %v810
  %v828 = vmul.f32 %v544, %v810
  %v829 = vmul.f32 %v547, %v810
  %v830 = vmul.f32 %v552, %v810
  %v831 = vmul.f32 %v555, %v810
  %v832 = vmul.f32 %v560, %v810
  %v833 = vmul.f32 %v563, %v810
  %v834 = vmul.f32 %v568, %v810
  %v835 = vmul.f32 %v571, %v810
  %v836 = vmul.f32 %v576, %v810
  %v837 = vmul.f32 %v579, %v810
  %v838 = vmul.f32 %v584, %v810
  %v839 = vmul.f32 %v587, %v810
  %v840 = vmul.f32 %v592, %v810
  %v841 = vmul.f32 %v595, %v810
  %v842 = vmul.f32 %v600, %v810
  %v843 = vmul.f32 %v603, %v810
  %v844 = vmul.f32 %v608, %v810
  %v845 = vmul.f32 %v611, %v810
  %v846 = vmul.f32 %v616, %v810
  %v847 = vmul.f32 %v619, %v810
  %v848 = vmul.f32 %v624, %v810
  %v849 = vmul.f32 %v627, %v810
  %v850 = vmul.f32 %v632, %v810
  %v851 = vmul.f32 %v635, %v810
  %v852 = vmul.f32 %v640, %v810
  %v853 = vmul.f32 %v643, %v810
  %v854 = vmul.f32 %v648, %v810
  %v855 = vmul.f32 %v651, %v810
  %v856 = vmul.f32 %v656, %v810
  %v857 = vmul.f32 %v659, %v810
  %v858 = vmul.f32 %v664, %v810
  %v859 = vmul.f32 %v667, %v810
  %v860 = vmul.f32 %v672, %v810
  %v861 = vmul.f32 %v675, %v810
  %v862 = vmul.f32 %v680, %v810
  %v863 = vmul.f32 %v683, %v810
  %v864 = vmul.f32 %v688, %v810
  %v865 = vmul.f32 %v691, %v810
  %v866 = vmul.f32 %v696, %v810
  %v867 = vmul.f32 %v699, %v810
  %v868 = vmul.f32 %v704, %v810
  %v869 = vmul.f32 %v707, %v810
  %v870 = vmul.f32 %v712, %v810
  %v871 = vmul.f32 %v715, %v810
  %v872 = vmul.f32 %v720, %v810
  %v873 = vmul.f32 %v723, %v810
  %v874 = vmul.f32 %v728, %v810
  %v875 = vmul.f32 %v731, %v810
  %v876 = vmul.f32 %v736, %v810
  %v877 = vmul.f32 %v739, %v810
  %v878 = vmul.f32 %v744, %v810
  %v879 = vmul.f32 %v747, %v810
  %v880 = vmul.f32 %v752, %v810
  %v881 = vmul.f32 %v755, %v810
  %v882 = vmul.f32 %v760, %v810
  %v883 = vmul.f32 %v763, %v810
  %v884 = vmul.f32 %v768, %v810
  %v885 = vmul.f32 %v771, %v810
  %v886 = vmul.f32 %v776, %v810
  %v887 = vmul.f32 %v779, %v810
  %v888 = vmul.f32 %v784, %v810
  %v889 = vmul.f32 %v787, %v810
  %v890 = vmul.f32 %v792, %v810
  %v891 = vmul.f32 %v795, %v810
  %v892 = vmul.f32 %v800, %v810
  %v893 = vld [vmem:[%s3] sm:$0x1]
  %v895 = vlaneseq
  %v896 = vshrl.u32 %v895, 7
  %v897 = vsub.s32 0, %v896
  %v898 = vrot.slane %v893, %v897
  %v900 = vadd.f32 %v812, %v898
  %v901 = vadd.f32 %v813, %v898
  %v902 = vadd.f32 %v814, %v898
  %v903 = vadd.f32 %v815, %v898
  %v904 = vadd.f32 %v816, %v898
  %v905 = vadd.f32 %v817, %v898
  %v906 = vadd.f32 %v818, %v898
  %v907 = vadd.f32 %v819, %v898
  %v908 = vadd.f32 %v820, %v898
  %v909 = vadd.f32 %v821, %v898
  %v910 = vadd.f32 %v822, %v898
  %v911 = vadd.f32 %v823, %v898
  %v912 = vadd.f32 %v824, %v898
  %v913 = vadd.f32 %v825, %v898
  %v914 = vadd.f32 %v826, %v898
  %v915 = vadd.f32 %v827, %v898
  %v916 = vadd.f32 %v828, %v898
  %v917 = vadd.f32 %v829, %v898
  %v918 = vadd.f32 %v830, %v898
  %v919 = vadd.f32 %v831, %v898
  %v920 = vadd.f32 %v832, %v898
  %v921 = vadd.f32 %v833, %v898
  %v922 = vadd.f32 %v834, %v898
  %v923 = vadd.f32 %v835, %v898
  %v924 = vadd.f32 %v836, %v898
  %v925 = vadd.f32 %v837, %v898
  %v926 = vadd.f32 %v838, %v898
  %v927 = vadd.f32 %v839, %v898
  %v928 = vadd.f32 %v840, %v898
  %v929 = vadd.f32 %v841, %v898
  %v930 = vadd.f32 %v842, %v898
  %v931 = vadd.f32 %v843, %v898
  %v932 = vadd.f32 %v844, %v898
  %v933 = vadd.f32 %v845, %v898
  %v934 = vadd.f32 %v846, %v898
  %v935 = vadd.f32 %v847, %v898
  %v936 = vadd.f32 %v848, %v898
  %v937 = vadd.f32 %v849, %v898
  %v938 = vadd.f32 %v850, %v898
  %v939 = vadd.f32 %v851, %v898
  %v940 = vadd.f32 %v852, %v898
  %v941 = vadd.f32 %v853, %v898
  %v942 = vadd.f32 %v854, %v898
  %v943 = vadd.f32 %v855, %v898
  %v944 = vadd.f32 %v856, %v898
  %v945 = vadd.f32 %v857, %v898
  %v946 = vadd.f32 %v858, %v898
  %v947 = vadd.f32 %v859, %v898
  %v948 = vadd.f32 %v860, %v898
  %v949 = vadd.f32 %v861, %v898
  %v950 = vadd.f32 %v862, %v898
  %v951 = vadd.f32 %v863, %v898
  %v952 = vadd.f32 %v864, %v898
  %v953 = vadd.f32 %v865, %v898
  %v954 = vadd.f32 %v866, %v898
  %v955 = vadd.f32 %v867, %v898
  %v956 = vadd.f32 %v868, %v898
  %v957 = vadd.f32 %v869, %v898
  %v958 = vadd.f32 %v870, %v898
  %v959 = vadd.f32 %v871, %v898
  %v960 = vadd.f32 %v872, %v898
  %v961 = vadd.f32 %v873, %v898
  %v962 = vadd.f32 %v874, %v898
  %v963 = vadd.f32 %v875, %v898
  %v964 = vadd.f32 %v876, %v898
  %v965 = vadd.f32 %v877, %v898
  %v966 = vadd.f32 %v878, %v898
  %v967 = vadd.f32 %v879, %v898
  %v968 = vadd.f32 %v880, %v898
  %v969 = vadd.f32 %v881, %v898
  %v970 = vadd.f32 %v882, %v898
  %v971 = vadd.f32 %v883, %v898
  %v972 = vadd.f32 %v884, %v898
  %v973 = vadd.f32 %v885, %v898
  %v974 = vadd.f32 %v886, %v898
  %v975 = vadd.f32 %v887, %v898
  %v976 = vadd.f32 %v888, %v898
  %v977 = vadd.f32 %v889, %v898
  %v978 = vadd.f32 %v890, %v898
  %v979 = vadd.f32 %v891, %v898
  %v980 = vadd.f32 %v892, %v898
  %v981 = vmax.f32 %v900, 0.0
  %v982 = vmax.f32 %v901, 0.0
  %v983 = vmax.f32 %v902, 0.0
  %v984 = vmax.f32 %v903, 0.0
  %v985 = vmax.f32 %v904, 0.0
  %v986 = vmax.f32 %v905, 0.0
  %v987 = vmax.f32 %v906, 0.0
  %v988 = vmax.f32 %v907, 0.0
  %v989 = vmax.f32 %v908, 0.0
  %v990 = vmax.f32 %v909, 0.0
  %v991 = vmax.f32 %v910, 0.0
  %v992 = vmax.f32 %v911, 0.0
  %v993 = vmax.f32 %v912, 0.0
  %v994 = vmax.f32 %v913, 0.0
  %v995 = vmax.f32 %v914, 0.0
  %v996 = vmax.f32 %v915, 0.0
  %v997 = vmax.f32 %v916, 0.0
  %v998 = vmax.f32 %v917, 0.0
  %v999 = vmax.f32 %v918, 0.0
  %v1000 = vmax.f32 %v919, 0.0
  %v1001 = vmax.f32 %v920, 0.0
  %v1002 = vmax.f32 %v921, 0.0
  %v1003 = vmax.f32 %v922, 0.0
  %v1004 = vmax.f32 %v923, 0.0
  %v1005 = vmax.f32 %v924, 0.0
  %v1006 = vmax.f32 %v925, 0.0
  %v1007 = vmax.f32 %v926, 0.0
  %v1008 = vmax.f32 %v927, 0.0
  %v1009 = vmax.f32 %v928, 0.0
  %v1010 = vmax.f32 %v929, 0.0
  %v1011 = vmax.f32 %v930, 0.0
  %v1012 = vmax.f32 %v931, 0.0
  %v1013 = vmax.f32 %v932, 0.0
  %v1014 = vmax.f32 %v933, 0.0
  %v1015 = vmax.f32 %v934, 0.0
  %v1016 = vmax.f32 %v935, 0.0
  %v1017 = vmax.f32 %v936, 0.0
  %v1018 = vmax.f32 %v937, 0.0
  %v1019 = vmax.f32 %v938, 0.0
  %v1020 = vmax.f32 %v939, 0.0
  %v1021 = vmax.f32 %v940, 0.0
  %v1022 = vmax.f32 %v941, 0.0
  %v1023 = vmax.f32 %v942, 0.0
  %v1024 = vmax.f32 %v943, 0.0
  %v1025 = vmax.f32 %v944, 0.0
  %v1026 = vmax.f32 %v945, 0.0
  %v1027 = vmax.f32 %v946, 0.0
  %v1028 = vmax.f32 %v947, 0.0
  %v1029 = vmax.f32 %v948, 0.0
  %v1030 = vmax.f32 %v949, 0.0
  %v1031 = vmax.f32 %v950, 0.0
  %v1032 = vmax.f32 %v951, 0.0
  %v1033 = vmax.f32 %v952, 0.0
  %v1034 = vmax.f32 %v953, 0.0
  %v1035 = vmax.f32 %v954, 0.0
  %v1036 = vmax.f32 %v955, 0.0
  %v1037 = vmax.f32 %v956, 0.0
  %v1038 = vmax.f32 %v957, 0.0
  %v1039 = vmax.f32 %v958, 0.0
  %v1040 = vmax.f32 %v959, 0.0
  %v1041 = vmax.f32 %v960, 0.0
  %v1042 = vmax.f32 %v961, 0.0
  %v1043 = vmax.f32 %v962, 0.0
  %v1044 = vmax.f32 %v963, 0.0
  %v1045 = vmax.f32 %v964, 0.0
  %v1046 = vmax.f32 %v965, 0.0
  %v1047 = vmax.f32 %v966, 0.0
  %v1048 = vmax.f32 %v967, 0.0
  %v1049 = vmax.f32 %v968, 0.0
  %v1050 = vmax.f32 %v969, 0.0
  %v1051 = vmax.f32 %v970, 0.0
  %v1052 = vmax.f32 %v971, 0.0
  %v1053 = vmax.f32 %v972, 0.0
  %v1054 = vmax.f32 %v973, 0.0
  %v1055 = vmax.f32 %v974, 0.0
  %v1056 = vmax.f32 %v975, 0.0
  %v1057 = vmax.f32 %v976, 0.0
  %v1058 = vmax.f32 %v977, 0.0
  %v1059 = vmax.f32 %v978, 0.0
  %v1060 = vmax.f32 %v979, 0.0
  %v1061 = vmax.f32 %v980, 0.0
  %v1062 = vld [vmem:[%s4] sm:$0xff]
  %v1063 = vld [vmem:[%s4 + $0x8] sm:$0xff]
  %v1064 = vld [vmem:[%s4 + $0x10] sm:$0xff]
  %v1065 = vld [vmem:[%s4 + $0x18] sm:$0xff]
  %v1066 = vld [vmem:[%s4 + $0x20] sm:$0xff]
  %v1067 = vld [vmem:[%s4 + $0x28] sm:$0xff]
  %v1068 = vld [vmem:[%s4 + $0x30] sm:$0xff]
  %v1069 = vld [vmem:[%s4 + $0x38] sm:$0xff]
  %v1070 = vld [vmem:[%s4 + $0x40] sm:$0xff]
  %v1071 = vld [vmem:[%s4 + $0x48] sm:$0xff]
  %v1072 = vld [vmem:[%s4 + $0x50] sm:$0xff]
  %v1073 = vld [vmem:[%s4 + $0x58] sm:$0xff]
  %v1074 = vld [vmem:[%s4 + $0x60] sm:$0xff]
  %v1075 = vld [vmem:[%s4 + $0x68] sm:$0xff]
  %v1076 = vld [vmem:[%s4 + $0x70] sm:$0xff]
  %v1077 = vld [vmem:[%s4 + $0x78] sm:$0xff]
  %v1078 = vld [vmem:[%s4 + $0x80] sm:$0xff]
  %v1079 = vld [vmem:[%s4 + $0x88] sm:$0xff]
  %v1080 = vld [vmem:[%s4 + $0x90] sm:$0xff]
  %v1081 = vld [vmem:[%s4 + $0x98] sm:$0xff]
  %v1082 = vld [vmem:[%s4 + $0xa0] sm:$0xff]
  %v1083 = vld [vmem:[%s4 + $0xa8] sm:$0xff]
  %v1084 = vld [vmem:[%s4 + $0xb0] sm:$0xff]
  %v1085 = vld [vmem:[%s4 + $0xb8] sm:$0xff]
  %v1086 = vld [vmem:[%s4 + $0xc0] sm:$0xff]
  %v1087 = vld [vmem:[%s4 + $0xc8] sm:$0xff]
  %v1088 = vld [vmem:[%s4 + $0xd0] sm:$0xff]
  %v1089 = vld [vmem:[%s4 + $0xd8] sm:$0xff]
  %v1090 = vld [vmem:[%s4 + $0xe0] sm:$0xff]
  %v1091 = vld [vmem:[%s4 + $0xe8] sm:$0xff]
  %v1092 = vld [vmem:[%s4 + $0xf0] sm:$0xff]
  %v1093 = vld [vmem:[%s4 + $0xf8] sm:$0xff]
  %v1094 = vld [vmem:[%s4 + $0x100] sm:$0xff]
  %v1095 = vld [vmem:[%s4 + $0x108] sm:$0xff]
  %v1096 = vld [vmem:[%s4 + $0x110] sm:$0xff]
  %v1097 = vld [vmem:[%s4 + $0x118] sm:$0xff]
  %v1098 = vld [vmem:[%s4 + $0x120] sm:$0xff]
  %v1099 = vld [vmem:[%s4 + $0x128] sm:$0xff]
  %v1100 = vld [vmem:[%s4 + $0x130] sm:$0xff]
  %v1101 = vld [vmem:[%s4 + $0x138] sm:$0xff]
  %v1102 = vld [vmem:[%s4 + $0x140] sm:$0xff]
  %v1103 = vld [vmem:[%s4 + $0x148] sm:$0xff]
  %v1104 = vld [vmem:[%s4 + $0x150] sm:$0xff]
  %v1105 = vld [vmem:[%s4 + $0x158] sm:$0xff]
  %v1106 = vld [vmem:[%s4 + $0x160] sm:$0xff]
  %v1107 = vld [vmem:[%s4 + $0x168] sm:$0xff]
  %v1108 = vld [vmem:[%s4 + $0x170] sm:$0xff]
  %v1109 = vld [vmem:[%s4 + $0x178] sm:$0xff]
  %v1110 = vld [vmem:[%s4 + $0x180] sm:$0xff]
  %v1111 = vld [vmem:[%s4 + $0x188] sm:$0xff]
  %v1112 = vld [vmem:[%s4 + $0x190] sm:$0xff]
  %v1113 = vld [vmem:[%s4 + $0x198] sm:$0xff]
  %v1114 = vld [vmem:[%s4 + $0x1a0] sm:$0xff]
  %v1115 = vld [vmem:[%s4 + $0x1a8] sm:$0xff]
  %v1116 = vld [vmem:[%s4 + $0x1b0] sm:$0xff]
  %v1117 = vld [vmem:[%s4 + $0x1b8] sm:$0xff]
  %v1118 = vld [vmem:[%s4 + $0x1c0] sm:$0xff]
  %v1119 = vld [vmem:[%s4 + $0x1c8] sm:$0xff]
  %v1120 = vld [vmem:[%s4 + $0x1d0] sm:$0xff]
  %v1121 = vld [vmem:[%s4 + $0x1d8] sm:$0xff]
  %v1122 = vld [vmem:[%s4 + $0x1e0] sm:$0xff]
  %v1123 = vld [vmem:[%s4 + $0x1e8] sm:$0xff]
  %v1124 = vld [vmem:[%s4 + $0x1f0] sm:$0xff]
  %v1125 = vld [vmem:[%s4 + $0x1f8] sm:$0xff]
  %v1126 = vld [vmem:[%s4 + $0x200] sm:$0xff]
  %v1127 = vld [vmem:[%s4 + $0x208] sm:$0xff]
  %v1128 = vld [vmem:[%s4 + $0x210] sm:$0xff]
  %v1129 = vld [vmem:[%s4 + $0x218] sm:$0xff]
  %v1130 = vld [vmem:[%s4 + $0x220] sm:$0xff]
  %v1131 = vld [vmem:[%s4 + $0x228] sm:$0xff]
  %v1132 = vld [vmem:[%s4 + $0x230] sm:$0xff]
  %v1133 = vld [vmem:[%s4 + $0x238] sm:$0xff]
  %v1134 = vld [vmem:[%s4 + $0x240] sm:$0xff]
  %v1135 = vld [vmem:[%s4 + $0x248] sm:$0xff]
  %v1136 = vld [vmem:[%s4 + $0x250] sm:$0xff]
  %v1137 = vld [vmem:[%s4 + $0x258] sm:$0xff]
  %v1138 = vld [vmem:[%s4 + $0x260] sm:$0xff]
  %v1139 = vld [vmem:[%s4 + $0x268] sm:$0xff]
  %v1140 = vld [vmem:[%s4 + $0x270] sm:$0xff]
  %v1141 = vld [vmem:[%s4 + $0x278] sm:$0xff]
  %v1142 = vld [vmem:[%s4 + $0x280] sm:$0xff]
  %1144 = vset.pattern.permute.xlu0 0
  %1145 = vperm.xlu0 %1144, %v1062
  %v1146 = vpop.permute.xlu0 %1145
  %1149 = vset.pattern.permute.xlu0 0
  %1150 = vperm.xlu0 %1149, %v1063
  %v1151 = vpop.permute.xlu0 %1150
  %1154 = vset.pattern.permute.xlu0 0
  %1155 = vperm.xlu0 %1154, %v1064
  %v1156 = vpop.permute.xlu0 %1155
  %1159 = vset.pattern.permute.xlu0 0
  %1160 = vperm.xlu0 %1159, %v1065
  %v1161 = vpop.permute.xlu0 %1160
  %1164 = vset.pattern.permute.xlu0 0
  %1165 = vperm.xlu0 %1164, %v1066
  %v1166 = vpop.permute.xlu0 %1165
  %1169 = vset.pattern.permute.xlu0 0
  %1170 = vperm.xlu0 %1169, %v1067
  %v1171 = vpop.permute.xlu0 %1170
  %1174 = vset.pattern.permute.xlu0 0
  %1175 = vperm.xlu0 %1174, %v1068
  %v1176 = vpop.permute.xlu0 %1175
  %1179 = vset.pattern.permute.xlu0 0
  %1180 = vperm.xlu0 %1179, %v1069
  %v1181 = vpop.permute.xlu0 %1180
  %1184 = vset.pattern.permute.xlu0 0
  %1185 = vperm.xlu0 %1184, %v1070
  %v1186 = vpop.permute.xlu0 %1185
  %1189 = vset.pattern.permute.xlu0 0
  %1190 = vperm.xlu0 %1189, %v1071
  %v1191 = vpop.permute.xlu0 %1190
  %1194 = vset.pattern.permute.xlu0 0
  %1195 = vperm.xlu0 %1194, %v1072
  %v1196 = vpop.permute.xlu0 %1195
  %1199 = vset.pattern.permute.xlu0 0
  %1200 = vperm.xlu0 %1199, %v1073
  %v1201 = vpop.permute.xlu0 %1200
  %1204 = vset.pattern.permute.xlu0 0
  %1205 = vperm.xlu0 %1204, %v1074
  %v1206 = vpop.permute.xlu0 %1205
  %1209 = vset.pattern.permute.xlu0 0
  %1210 = vperm.xlu0 %1209, %v1075
  %v1211 = vpop.permute.xlu0 %1210
  %1214 = vset.pattern.permute.xlu0 0
  %1215 = vperm.xlu0 %1214, %v1076
  %v1216 = vpop.permute.xlu0 %1215
  %1219 = vset.pattern.permute.xlu0 0
  %1220 = vperm.xlu0 %1219, %v1077
  %v1221 = vpop.permute.xlu0 %1220
  %1224 = vset.pattern.permute.xlu0 0
  %1225 = vperm.xlu0 %1224, %v1078
  %v1226 = vpop.permute.xlu0 %1225
  %1229 = vset.pattern.permute.xlu0 0
  %1230 = vperm.xlu0 %1229, %v1079
  %v1231 = vpop.permute.xlu0 %1230
  %1234 = vset.pattern.permute.xlu0 0
  %1235 = vperm.xlu0 %1234, %v1080
  %v1236 = vpop.permute.xlu0 %1235
  %1239 = vset.pattern.permute.xlu0 0
  %1240 = vperm.xlu0 %1239, %v1081
  %v1241 = vpop.permute.xlu0 %1240
  %1244 = vset.pattern.permute.xlu0 0
  %1245 = vperm.xlu0 %1244, %v1082
  %v1246 = vpop.permute.xlu0 %1245
  %1249 = vset.pattern.permute.xlu0 0
  %1250 = vperm.xlu0 %1249, %v1083
  %v1251 = vpop.permute.xlu0 %1250
  %1254 = vset.pattern.permute.xlu0 0
  %1255 = vperm.xlu0 %1254, %v1084
  %v1256 = vpop.permute.xlu0 %1255
  %1259 = vset.pattern.permute.xlu0 0
  %1260 = vperm.xlu0 %1259, %v1085
  %v1261 = vpop.permute.xlu0 %1260
  %1264 = vset.pattern.permute.xlu0 0
  %1265 = vperm.xlu0 %1264, %v1086
  %v1266 = vpop.permute.xlu0 %1265
  %1269 = vset.pattern.permute.xlu0 0
  %1270 = vperm.xlu0 %1269, %v1087
  %v1271 = vpop.permute.xlu0 %1270
  %1274 = vset.pattern.permute.xlu0 0
  %1275 = vperm.xlu0 %1274, %v1088
  %v1276 = vpop.permute.xlu0 %1275
  %1279 = vset.pattern.permute.xlu0 0
  %1280 = vperm.xlu0 %1279, %v1089
  %v1281 = vpop.permute.xlu0 %1280
  %1284 = vset.pattern.permute.xlu0 0
  %1285 = vperm.xlu0 %1284, %v1090
  %v1286 = vpop.permute.xlu0 %1285
  %1289 = vset.pattern.permute.xlu0 0
  %1290 = vperm.xlu0 %1289, %v1091
  %v1291 = vpop.permute.xlu0 %1290
  %1294 = vset.pattern.permute.xlu0 0
  %1295 = vperm.xlu0 %1294, %v1092
  %v1296 = vpop.permute.xlu0 %1295
  %1299 = vset.pattern.permute.xlu0 0
  %1300 = vperm.xlu0 %1299, %v1093
  %v1301 = vpop.permute.xlu0 %1300
  %1304 = vset.pattern.permute.xlu0 0
  %1305 = vperm.xlu0 %1304, %v1094
  %v1306 = vpop.permute.xlu0 %1305
  %1309 = vset.pattern.permute.xlu0 0
  %1310 = vperm.xlu0 %1309, %v1095
  %v1311 = vpop.permute.xlu0 %1310
  %1314 = vset.pattern.permute.xlu0 0
  %1315 = vperm.xlu0 %1314, %v1096
  %v1316 = vpop.permute.xlu0 %1315
  %1319 = vset.pattern.permute.xlu0 0
  %1320 = vperm.xlu0 %1319, %v1097
  %v1321 = vpop.permute.xlu0 %1320
  %1324 = vset.pattern.permute.xlu0 0
  %1325 = vperm.xlu0 %1324, %v1098
  %v1326 = vpop.permute.xlu0 %1325
  %1329 = vset.pattern.permute.xlu0 0
  %1330 = vperm.xlu0 %1329, %v1099
  %v1331 = vpop.permute.xlu0 %1330
  %1334 = vset.pattern.permute.xlu0 0
  %1335 = vperm.xlu0 %1334, %v1100
  %v1336 = vpop.permute.xlu0 %1335
  %1339 = vset.pattern.permute.xlu0 0
  %1340 = vperm.xlu0 %1339, %v1101
  %v1341 = vpop.permute.xlu0 %1340
  %1344 = vset.pattern.permute.xlu0 0
  %1345 = vperm.xlu0 %1344, %v1102
  %v1346 = vpop.permute.xlu0 %1345
  %1349 = vset.pattern.permute.xlu0 0
  %1350 = vperm.xlu0 %1349, %v1103
  %v1351 = vpop.permute.xlu0 %1350
  %1354 = vset.pattern.permute.xlu0 0
  %1355 = vperm.xlu0 %1354, %v1104
  %v1356 = vpop.permute.xlu0 %1355
  %1359 = vset.pattern.permute.xlu0 0
  %1360 = vperm.xlu0 %1359, %v1105
  %v1361 = vpop.permute.xlu0 %1360
  %1364 = vset.pattern.permute.xlu0 0
  %1365 = vperm.xlu0 %1364, %v1106
  %v1366 = vpop.permute.xlu0 %1365
  %1369 = vset.pattern.permute.xlu0 0
  %1370 = vperm.xlu0 %1369, %v1107
  %v1371 = vpop.permute.xlu0 %1370
  %1374 = vset.pattern.permute.xlu0 0
  %1375 = vperm.xlu0 %1374, %v1108
  %v1376 = vpop.permute.xlu0 %1375
  %1379 = vset.pattern.permute.xlu0 0
  %1380 = vperm.xlu0 %1379, %v1109
  %v1381 = vpop.permute.xlu0 %1380
  %1384 = vset.pattern.permute.xlu0 0
  %1385 = vperm.xlu0 %1384, %v1110
  %v1386 = vpop.permute.xlu0 %1385
  %1389 = vset.pattern.permute.xlu0 0
  %1390 = vperm.xlu0 %1389, %v1111
  %v1391 = vpop.permute.xlu0 %1390
  %1394 = vset.pattern.permute.xlu0 0
  %1395 = vperm.xlu0 %1394, %v1112
  %v1396 = vpop.permute.xlu0 %1395
  %1399 = vset.pattern.permute.xlu0 0
  %1400 = vperm.xlu0 %1399, %v1113
  %v1401 = vpop.permute.xlu0 %1400
  %1404 = vset.pattern.permute.xlu0 0
  %1405 = vperm.xlu0 %1404, %v1114
  %v1406 = vpop.permute.xlu0 %1405
  %1409 = vset.pattern.permute.xlu0 0
  %1410 = vperm.xlu0 %1409, %v1115
  %v1411 = vpop.permute.xlu0 %1410
  %1414 = vset.pattern.permute.xlu0 0
  %1415 = vperm.xlu0 %1414, %v1116
  %v1416 = vpop.permute.xlu0 %1415
  %1419 = vset.pattern.permute.xlu0 0
  %1420 = vperm.xlu0 %1419, %v1117
  %v1421 = vpop.permute.xlu0 %1420
  %1424 = vset.pattern.permute.xlu0 0
  %1425 = vperm.xlu0 %1424, %v1118
  %v1426 = vpop.permute.xlu0 %1425
  %1429 = vset.pattern.permute.xlu0 0
  %1430 = vperm.xlu0 %1429, %v1119
  %v1431 = vpop.permute.xlu0 %1430
  %1434 = vset.pattern.permute.xlu0 0
  %1435 = vperm.xlu0 %1434, %v1120
  %v1436 = vpop.permute.xlu0 %1435
  %1439 = vset.pattern.permute.xlu0 0
  %1440 = vperm.xlu0 %1439, %v1121
  %v1441 = vpop.permute.xlu0 %1440
  %1444 = vset.pattern.permute.xlu0 0
  %1445 = vperm.xlu0 %1444, %v1122
  %v1446 = vpop.permute.xlu0 %1445
  %1449 = vset.pattern.permute.xlu0 0
  %1450 = vperm.xlu0 %1449, %v1123
  %v1451 = vpop.permute.xlu0 %1450
  %1454 = vset.pattern.permute.xlu0 0
  %1455 = vperm.xlu0 %1454, %v1124
  %v1456 = vpop.permute.xlu0 %1455
  %1459 = vset.pattern.permute.xlu0 0
  %1460 = vperm.xlu0 %1459, %v1125
  %v1461 = vpop.permute.xlu0 %1460
  %1464 = vset.pattern.permute.xlu0 0
  %1465 = vperm.xlu0 %1464, %v1126
  %v1466 = vpop.permute.xlu0 %1465
  %1469 = vset.pattern.permute.xlu0 0
  %1470 = vperm.xlu0 %1469, %v1127
  %v1471 = vpop.permute.xlu0 %1470
  %1474 = vset.pattern.permute.xlu0 0
  %1475 = vperm.xlu0 %1474, %v1128
  %v1476 = vpop.permute.xlu0 %1475
  %1479 = vset.pattern.permute.xlu0 0
  %1480 = vperm.xlu0 %1479, %v1129
  %v1481 = vpop.permute.xlu0 %1480
  %1484 = vset.pattern.permute.xlu0 0
  %1485 = vperm.xlu0 %1484, %v1130
  %v1486 = vpop.permute.xlu0 %1485
  %1489 = vset.pattern.permute.xlu0 0
  %1490 = vperm.xlu0 %1489, %v1131
  %v1491 = vpop.permute.xlu0 %1490
  %1494 = vset.pattern.permute.xlu0 0
  %1495 = vperm.xlu0 %1494, %v1132
  %v1496 = vpop.permute.xlu0 %1495
  %1499 = vset.pattern.permute.xlu0 0
  %1500 = vperm.xlu0 %1499, %v1133
  %v1501 = vpop.permute.xlu0 %1500
  %1504 = vset.pattern.permute.xlu0 0
  %1505 = vperm.xlu0 %1504, %v1134
  %v1506 = vpop.permute.xlu0 %1505
  %1509 = vset.pattern.permute.xlu0 0
  %1510 = vperm.xlu0 %1509, %v1135
  %v1511 = vpop.permute.xlu0 %1510
  %1514 = vset.pattern.permute.xlu0 0
  %1515 = vperm.xlu0 %1514, %v1136
  %v1516 = vpop.permute.xlu0 %1515
  %1519 = vset.pattern.permute.xlu0 0
  %1520 = vperm.xlu0 %1519, %v1137
  %v1521 = vpop.permute.xlu0 %1520
  %1524 = vset.pattern.permute.xlu0 0
  %1525 = vperm.xlu0 %1524, %v1138
  %v1526 = vpop.permute.xlu0 %1525
  %1529 = vset.pattern.permute.xlu0 0
  %1530 = vperm.xlu0 %1529, %v1139
  %v1531 = vpop.permute.xlu0 %1530
  %1534 = vset.pattern.permute.xlu0 0
  %1535 = vperm.xlu0 %1534, %v1140
  %v1536 = vpop.permute.xlu0 %1535
  %1539 = vset.pattern.permute.xlu0 0
  %1540 = vperm.xlu0 %1539, %v1141
  %v1541 = vpop.permute.xlu0 %1540
  %1544 = vset.pattern.permute.xlu0 0
  %1545 = vperm.xlu0 %1544, %v1142
  %v1546 = vpop.permute.xlu0 %1545
  %v1548 = vmul.f32 %v981, %v1146
  %v1549 = vmul.f32 %v982, %v1151
  %v1550 = vmul.f32 %v983, %v1156
  %v1551 = vmul.f32 %v984, %v1161
  %v1552 = vmul.f32 %v985, %v1166
  %v1553 = vmul.f32 %v986, %v1171
  %v1554 = vmul.f32 %v987, %v1176
  %v1555 = vmul.f32 %v988, %v1181
  %v1556 = vmul.f32 %v989, %v1186
  %v1557 = vmul.f32 %v990, %v1191
  %v1558 = vmul.f32 %v991, %v1196
  %v1559 = vmul.f32 %v992, %v1201
  %v1560 = vmul.f32 %v993, %v1206
  %v1561 = vmul.f32 %v994, %v1211
  %v1562 = vmul.f32 %v995, %v1216
  %v1563 = vmul.f32 %v996, %v1221
  %v1564 = vmul.f32 %v997, %v1226
  %v1565 = vmul.f32 %v998, %v1231
  %v1566 = vmul.f32 %v999, %v1236
  %v1567 = vmul.f32 %v1000, %v1241
  %v1568 = vmul.f32 %v1001, %v1246
  %v1569 = vmul.f32 %v1002, %v1251
  %v1570 = vmul.f32 %v1003, %v1256
  %v1571 = vmul.f32 %v1004, %v1261
  %v1572 = vmul.f32 %v1005, %v1266
  %v1573 = vmul.f32 %v1006, %v1271
  %v1574 = vmul.f32 %v1007, %v1276
  %v1575 = vmul.f32 %v1008, %v1281
  %v1576 = vmul.f32 %v1009, %v1286
  %v1577 = vmul.f32 %v1010, %v1291
  %v1578 = vmul.f32 %v1011, %v1296
  %v1579 = vmul.f32 %v1012, %v1301
  %v1580 = vmul.f32 %v1013, %v1306
  %v1581 = vmul.f32 %v1014, %v1311
  %v1582 = vmul.f32 %v1015, %v1316
  %v1583 = vmul.f32 %v1016, %v1321
  %v1584 = vmul.f32 %v1017, %v1326
  %v1585 = vmul.f32 %v1018, %v1331
  %v1586 = vmul.f32 %v1019, %v1336
  %v1587 = vmul.f32 %v1020, %v1341
  %v1588 = vmul.f32 %v1021, %v1346
  %v1589 = vmul.f32 %v1022, %v1351
  %v1590 = vmul.f32 %v1023, %v1356
  %v1591 = vmul.f32 %v1024, %v1361
  %v1592 = vmul.f32 %v1025, %v1366
  %v1593 = vmul.f32 %v1026, %v1371
  %v1594 = vmul.f32 %v1027, %v1376
  %v1595 = vmul.f32 %v1028, %v1381
  %v1596 = vmul.f32 %v1029, %v1386
  %v1597 = vmul.f32 %v1030, %v1391
  %v1598 = vmul.f32 %v1031, %v1396
  %v1599 = vmul.f32 %v1032, %v1401
  %v1600 = vmul.f32 %v1033, %v1406
  %v1601 = vmul.f32 %v1034, %v1411
  %v1602 = vmul.f32 %v1035, %v1416
  %v1603 = vmul.f32 %v1036, %v1421
  %v1604 = vmul.f32 %v1037, %v1426
  %v1605 = vmul.f32 %v1038, %v1431
  %v1606 = vmul.f32 %v1039, %v1436
  %v1607 = vmul.f32 %v1040, %v1441
  %v1608 = vmul.f32 %v1041, %v1446
  %v1609 = vmul.f32 %v1042, %v1451
  %v1610 = vmul.f32 %v1043, %v1456
  %v1611 = vmul.f32 %v1044, %v1461
  %v1612 = vmul.f32 %v1045, %v1466
  %v1613 = vmul.f32 %v1046, %v1471
  %v1614 = vmul.f32 %v1047, %v1476
  %v1615 = vmul.f32 %v1048, %v1481
  %v1616 = vmul.f32 %v1049, %v1486
  %v1617 = vmul.f32 %v1050, %v1491
  %v1618 = vmul.f32 %v1051, %v1496
  %v1619 = vmul.f32 %v1052, %v1501
  %v1620 = vmul.f32 %v1053, %v1506
  %v1621 = vmul.f32 %v1054, %v1511
  %v1622 = vmul.f32 %v1055, %v1516
  %v1623 = vmul.f32 %v1056, %v1521
  %v1624 = vmul.f32 %v1057, %v1526
  %v1625 = vmul.f32 %v1058, %v1531
  %v1626 = vmul.f32 %v1059, %v1536
  %v1627 = vmul.f32 %v1060, %v1541
  %v1628 = vmul.f32 %v1061, %v1546
  %v1629 = vpack.c.bf16 %v1549, %v1548
  %v1630 = vpack.c.bf16 %v1551, %v1550
  %v1631 = vpack.c.bf16 %v1553, %v1552
  %v1632 = vpack.c.bf16 %v1555, %v1554
  %v1633 = vpack.c.bf16 %v1557, %v1556
  %v1634 = vpack.c.bf16 %v1559, %v1558
  %v1635 = vpack.c.bf16 %v1561, %v1560
  %v1636 = vpack.c.bf16 %v1563, %v1562
  %v1637 = vpack.c.bf16 %v1565, %v1564
  %v1638 = vpack.c.bf16 %v1567, %v1566
  %v1639 = vpack.c.bf16 %v1569, %v1568
  %v1640 = vpack.c.bf16 %v1571, %v1570
  %v1641 = vpack.c.bf16 %v1573, %v1572
  %v1642 = vpack.c.bf16 %v1575, %v1574
  %v1643 = vpack.c.bf16 %v1577, %v1576
  %v1644 = vpack.c.bf16 %v1579, %v1578
  %v1645 = vpack.c.bf16 %v1581, %v1580
  %v1646 = vpack.c.bf16 %v1583, %v1582
  %v1647 = vpack.c.bf16 %v1585, %v1584
  %v1648 = vpack.c.bf16 %v1587, %v1586
  %v1649 = vpack.c.bf16 %v1589, %v1588
  %v1650 = vpack.c.bf16 %v1591, %v1590
  %v1651 = vpack.c.bf16 %v1593, %v1592
  %v1652 = vpack.c.bf16 %v1595, %v1594
  %v1653 = vpack.c.bf16 %v1597, %v1596
  %v1654 = vpack.c.bf16 %v1599, %v1598
  %v1655 = vpack.c.bf16 %v1601, %v1600
  %v1656 = vpack.c.bf16 %v1603, %v1602
  %v1657 = vpack.c.bf16 %v1605, %v1604
  %v1658 = vpack.c.bf16 %v1607, %v1606
  %v1659 = vpack.c.bf16 %v1609, %v1608
  %v1660 = vpack.c.bf16 %v1611, %v1610
  %v1661 = vpack.c.bf16 %v1613, %v1612
  %v1662 = vpack.c.bf16 %v1615, %v1614
  %v1663 = vpack.c.bf16 %v1617, %v1616
  %v1664 = vpack.c.bf16 %v1619, %v1618
  %v1665 = vpack.c.bf16 %v1621, %v1620
  %v1666 = vpack.c.bf16 %v1623, %v1622
  %v1667 = vpack.c.bf16 %v1625, %v1624
  %v1668 = vpack.c.bf16 %v1627, %v1626
  %v1669 = vpack.c.bf16 %v1628, %v1628
  %v1711 = vunpack.c.l.b16 %v1629
  %v1712 = vunpack.c.h.b16 %v1629
  %v1713 = vunpack.c.l.b16 %v1630
  %v1714 = vunpack.c.h.b16 %v1630
  %v1715 = vunpack.c.l.b16 %v1631
  %v1716 = vunpack.c.h.b16 %v1631
  %v1717 = vunpack.c.l.b16 %v1632
  %v1718 = vunpack.c.h.b16 %v1632
  %v1719 = vunpack.c.l.b16 %v1633
  %v1720 = vunpack.c.h.b16 %v1633
  %v1721 = vunpack.c.l.b16 %v1634
  %v1722 = vunpack.c.h.b16 %v1634
  %v1723 = vunpack.c.l.b16 %v1635
  %v1724 = vunpack.c.h.b16 %v1635
  %v1725 = vunpack.c.l.b16 %v1636
  %v1726 = vunpack.c.h.b16 %v1636
  %v1727 = vunpack.c.l.b16 %v1637
  %v1728 = vunpack.c.h.b16 %v1637
  %v1729 = vunpack.c.l.b16 %v1638
  %v1730 = vunpack.c.h.b16 %v1638
  %v1731 = vunpack.c.l.b16 %v1639
  %v1732 = vunpack.c.h.b16 %v1639
  %v1733 = vunpack.c.l.b16 %v1640
  %v1734 = vunpack.c.h.b16 %v1640
  %v1735 = vunpack.c.l.b16 %v1641
  %v1736 = vunpack.c.h.b16 %v1641
  %v1737 = vunpack.c.l.b16 %v1642
  %v1738 = vunpack.c.h.b16 %v1642
  %v1739 = vunpack.c.l.b16 %v1643
  %v1740 = vunpack.c.h.b16 %v1643
  %v1741 = vunpack.c.l.b16 %v1644
  %v1742 = vunpack.c.h.b16 %v1644
  %v1743 = vunpack.c.l.b16 %v1645
  %v1744 = vunpack.c.h.b16 %v1645
  %v1745 = vunpack.c.l.b16 %v1646
  %v1746 = vunpack.c.h.b16 %v1646
  %v1747 = vunpack.c.l.b16 %v1647
  %v1748 = vunpack.c.h.b16 %v1647
  %v1749 = vunpack.c.l.b16 %v1648
  %v1750 = vunpack.c.h.b16 %v1648
  %v1751 = vunpack.c.l.b16 %v1649
  %v1752 = vunpack.c.h.b16 %v1649
  %v1753 = vunpack.c.l.b16 %v1650
  %v1754 = vunpack.c.h.b16 %v1650
  %v1755 = vunpack.c.l.b16 %v1651
  %v1756 = vunpack.c.h.b16 %v1651
  %v1757 = vunpack.c.l.b16 %v1652
  %v1758 = vunpack.c.h.b16 %v1652
  %v1759 = vunpack.c.l.b16 %v1653
  %v1760 = vunpack.c.h.b16 %v1653
  %v1761 = vunpack.c.l.b16 %v1654
  %v1762 = vunpack.c.h.b16 %v1654
  %v1763 = vunpack.c.l.b16 %v1655
  %v1764 = vunpack.c.h.b16 %v1655
  %v1765 = vunpack.c.l.b16 %v1656
  %v1766 = vunpack.c.h.b16 %v1656
  %v1767 = vunpack.c.l.b16 %v1657
  %v1768 = vunpack.c.h.b16 %v1657
  %v1769 = vunpack.c.l.b16 %v1658
  %v1770 = vunpack.c.h.b16 %v1658
  %v1771 = vunpack.c.l.b16 %v1659
  %v1772 = vunpack.c.h.b16 %v1659
  %v1773 = vunpack.c.l.b16 %v1660
  %v1774 = vunpack.c.h.b16 %v1660
  %v1775 = vunpack.c.l.b16 %v1661
  %v1776 = vunpack.c.h.b16 %v1661
  %v1777 = vunpack.c.l.b16 %v1662
  %v1778 = vunpack.c.h.b16 %v1662
  %v1779 = vunpack.c.l.b16 %v1663
  %v1780 = vunpack.c.h.b16 %v1663
  %v1781 = vunpack.c.l.b16 %v1664
  %v1782 = vunpack.c.h.b16 %v1664
  %v1783 = vunpack.c.l.b16 %v1665
  %v1784 = vunpack.c.h.b16 %v1665
  %v1785 = vunpack.c.l.b16 %v1666
  %v1786 = vunpack.c.h.b16 %v1666
  %v1787 = vunpack.c.l.b16 %v1667
  %v1788 = vunpack.c.h.b16 %v1667
  %v1789 = vunpack.c.l.b16 %v1668
  %v1790 = vunpack.c.h.b16 %v1668
  %v1791 = vunpack.c.l.b16 %v1669
  %v1792 = vpack.c.b16 %v1711, %v1711
  %v1793 = vpack.c.b16 %v1712, %v1712
  %v1794 = vpack.c.b16 %v1713, %v1713
  %v1795 = vpack.c.b16 %v1714, %v1714
  %v1796 = vpack.c.b16 %v1715, %v1715
  %v1797 = vpack.c.b16 %v1716, %v1716
  %v1798 = vpack.c.b16 %v1717, %v1717
  %v1799 = vpack.c.b16 %v1718, %v1718
  %v1800 = vpack.c.b16 %v1719, %v1719
  %v1801 = vpack.c.b16 %v1720, %v1720
  %v1802 = vpack.c.b16 %v1721, %v1721
  %v1803 = vpack.c.b16 %v1722, %v1722
  %v1804 = vpack.c.b16 %v1723, %v1723
  %v1805 = vpack.c.b16 %v1724, %v1724
  %v1806 = vpack.c.b16 %v1725, %v1725
  %v1807 = vpack.c.b16 %v1726, %v1726
  %v1808 = vpack.c.b16 %v1727, %v1727
  %v1809 = vpack.c.b16 %v1728, %v1728
  %v1810 = vpack.c.b16 %v1729, %v1729
  %v1811 = vpack.c.b16 %v1730, %v1730
  %v1812 = vpack.c.b16 %v1731, %v1731
  %v1813 = vpack.c.b16 %v1732, %v1732
  %v1814 = vpack.c.b16 %v1733, %v1733
  %v1815 = vpack.c.b16 %v1734, %v1734
  %v1816 = vpack.c.b16 %v1735, %v1735
  %v1817 = vpack.c.b16 %v1736, %v1736
  %v1818 = vpack.c.b16 %v1737, %v1737
  %v1819 = vpack.c.b16 %v1738, %v1738
  %v1820 = vpack.c.b16 %v1739, %v1739
  %v1821 = vpack.c.b16 %v1740, %v1740
  %v1822 = vpack.c.b16 %v1741, %v1741
  %v1823 = vpack.c.b16 %v1742, %v1742
  %v1824 = vpack.c.b16 %v1743, %v1743
  %v1825 = vpack.c.b16 %v1744, %v1744
  %v1826 = vpack.c.b16 %v1745, %v1745
  %v1827 = vpack.c.b16 %v1746, %v1746
  %v1828 = vpack.c.b16 %v1747, %v1747
  %v1829 = vpack.c.b16 %v1748, %v1748
  %v1830 = vpack.c.b16 %v1749, %v1749
  %v1831 = vpack.c.b16 %v1750, %v1750
  %v1832 = vpack.c.b16 %v1751, %v1751
  %v1833 = vpack.c.b16 %v1752, %v1752
  %v1834 = vpack.c.b16 %v1753, %v1753
  %v1835 = vpack.c.b16 %v1754, %v1754
  %v1836 = vpack.c.b16 %v1755, %v1755
  %v1837 = vpack.c.b16 %v1756, %v1756
  %v1838 = vpack.c.b16 %v1757, %v1757
  %v1839 = vpack.c.b16 %v1758, %v1758
  %v1840 = vpack.c.b16 %v1759, %v1759
  %v1841 = vpack.c.b16 %v1760, %v1760
  %v1842 = vpack.c.b16 %v1761, %v1761
  %v1843 = vpack.c.b16 %v1762, %v1762
  %v1844 = vpack.c.b16 %v1763, %v1763
  %v1845 = vpack.c.b16 %v1764, %v1764
  %v1846 = vpack.c.b16 %v1765, %v1765
  %v1847 = vpack.c.b16 %v1766, %v1766
  %v1848 = vpack.c.b16 %v1767, %v1767
  %v1849 = vpack.c.b16 %v1768, %v1768
  %v1850 = vpack.c.b16 %v1769, %v1769
  %v1851 = vpack.c.b16 %v1770, %v1770
  %v1852 = vpack.c.b16 %v1771, %v1771
  %v1853 = vpack.c.b16 %v1772, %v1772
  %v1854 = vpack.c.b16 %v1773, %v1773
  %v1855 = vpack.c.b16 %v1774, %v1774
  %v1856 = vpack.c.b16 %v1775, %v1775
  %v1857 = vpack.c.b16 %v1776, %v1776
  %v1858 = vpack.c.b16 %v1777, %v1777
  %v1859 = vpack.c.b16 %v1778, %v1778
  %v1860 = vpack.c.b16 %v1779, %v1779
  %v1861 = vpack.c.b16 %v1780, %v1780
  %v1862 = vpack.c.b16 %v1781, %v1781
  %v1863 = vpack.c.b16 %v1782, %v1782
  %v1864 = vpack.c.b16 %v1783, %v1783
  %v1865 = vpack.c.b16 %v1784, %v1784
  %v1866 = vpack.c.b16 %v1785, %v1785
  %v1867 = vpack.c.b16 %v1786, %v1786
  %v1868 = vpack.c.b16 %v1787, %v1787
  %v1869 = vpack.c.b16 %v1788, %v1788
  %v1870 = vpack.c.b16 %v1789, %v1789
  %v1871 = vpack.c.b16 %v1790, %v1790
  %v1872 = vpack.c.b16 %v1791, %v1791
  %vm1954 = vcmask 519168
  %1955 = vst.msk [vmem:[%s5] sm:$0xf] %vm1954, %v1792
  %1956 = vst.msk [vmem:[%s5 + $0x4] sm:$0xf] %vm1954, %v1793
  %1957 = vst.msk [vmem:[%s5 + $0x8] sm:$0xf] %vm1954, %v1794
  %1958 = vst.msk [vmem:[%s5 + $0xc] sm:$0xf] %vm1954, %v1795
  %1959 = vst.msk [vmem:[%s5 + $0x10] sm:$0xf] %vm1954, %v1796
  %1960 = vst.msk [vmem:[%s5 + $0x14] sm:$0xf] %vm1954, %v1797
  %1961 = vst.msk [vmem:[%s5 + $0x18] sm:$0xf] %vm1954, %v1798
  %1962 = vst.msk [vmem:[%s5 + $0x1c] sm:$0xf] %vm1954, %v1799
  %1963 = vst.msk [vmem:[%s5 + $0x20] sm:$0xf] %vm1954, %v1800
  %1964 = vst.msk [vmem:[%s5 + $0x24] sm:$0xf] %vm1954, %v1801
  %1965 = vst.msk [vmem:[%s5 + $0x28] sm:$0xf] %vm1954, %v1802
  %1966 = vst.msk [vmem:[%s5 + $0x2c] sm:$0xf] %vm1954, %v1803
  %1967 = vst.msk [vmem:[%s5 + $0x30] sm:$0xf] %vm1954, %v1804
  %1968 = vst.msk [vmem:[%s5 + $0x34] sm:$0xf] %vm1954, %v1805
  %1969 = vst.msk [vmem:[%s5 + $0x38] sm:$0xf] %vm1954, %v1806
  %1970 = vst.msk [vmem:[%s5 + $0x3c] sm:$0xf] %vm1954, %v1807
  %1971 = vst.msk [vmem:[%s5 + $0x40] sm:$0xf] %vm1954, %v1808
  %1972 = vst.msk [vmem:[%s5 + $0x44] sm:$0xf] %vm1954, %v1809
  %1973 = vst.msk [vmem:[%s5 + $0x48] sm:$0xf] %vm1954, %v1810
  %1974 = vst.msk [vmem:[%s5 + $0x4c] sm:$0xf] %vm1954, %v1811
  %1975 = vst.msk [vmem:[%s5 + $0x50] sm:$0xf] %vm1954, %v1812
  %1976 = vst.msk [vmem:[%s5 + $0x54] sm:$0xf] %vm1954, %v1813
  %1977 = vst.msk [vmem:[%s5 + $0x58] sm:$0xf] %vm1954, %v1814
  %1978 = vst.msk [vmem:[%s5 + $0x5c] sm:$0xf] %vm1954, %v1815
  %1979 = vst.msk [vmem:[%s5 + $0x60] sm:$0xf] %vm1954, %v1816
  %1980 = vst.msk [vmem:[%s5 + $0x64] sm:$0xf] %vm1954, %v1817
  %1981 = vst.msk [vmem:[%s5 + $0x68] sm:$0xf] %vm1954, %v1818
  %1982 = vst.msk [vmem:[%s5 + $0x6c] sm:$0xf] %vm1954, %v1819
  %1983 = vst.msk [vmem:[%s5 + $0x70] sm:$0xf] %vm1954, %v1820
  %1984 = vst.msk [vmem:[%s5 + $0x74] sm:$0xf] %vm1954, %v1821
  %1985 = vst.msk [vmem:[%s5 + $0x78] sm:$0xf] %vm1954, %v1822
  %1986 = vst.msk [vmem:[%s5 + $0x7c] sm:$0xf] %vm1954, %v1823
  %1987 = vst.msk [vmem:[%s5 + $0x80] sm:$0xf] %vm1954, %v1824
  %1988 = vst.msk [vmem:[%s5 + $0x84] sm:$0xf] %vm1954, %v1825
  %1989 = vst.msk [vmem:[%s5 + $0x88] sm:$0xf] %vm1954, %v1826
  %1990 = vst.msk [vmem:[%s5 + $0x8c] sm:$0xf] %vm1954, %v1827
  %1991 = vst.msk [vmem:[%s5 + $0x90] sm:$0xf] %vm1954, %v1828
  %1992 = vst.msk [vmem:[%s5 + $0x94] sm:$0xf] %vm1954, %v1829
  %1993 = vst.msk [vmem:[%s5 + $0x98] sm:$0xf] %vm1954, %v1830
  %1994 = vst.msk [vmem:[%s5 + $0x9c] sm:$0xf] %vm1954, %v1831
  %1995 = vst.msk [vmem:[%s5 + $0xa0] sm:$0xf] %vm1954, %v1832
  %1996 = vst.msk [vmem:[%s5 + $0xa4] sm:$0xf] %vm1954, %v1833
  %1997 = vst.msk [vmem:[%s5 + $0xa8] sm:$0xf] %vm1954, %v1834
  %1998 = vst.msk [vmem:[%s5 + $0xac] sm:$0xf] %vm1954, %v1835
  %1999 = vst.msk [vmem:[%s5 + $0xb0] sm:$0xf] %vm1954, %v1836
  %2000 = vst.msk [vmem:[%s5 + $0xb4] sm:$0xf] %vm1954, %v1837
  %2001 = vst.msk [vmem:[%s5 + $0xb8] sm:$0xf] %vm1954, %v1838
  %2002 = vst.msk [vmem:[%s5 + $0xbc] sm:$0xf] %vm1954, %v1839
  %2003 = vst.msk [vmem:[%s5 + $0xc0] sm:$0xf] %vm1954, %v1840
  %2004 = vst.msk [vmem:[%s5 + $0xc4] sm:$0xf] %vm1954, %v1841
  %2005 = vst.msk [vmem:[%s5 + $0xc8] sm:$0xf] %vm1954, %v1842
  %2006 = vst.msk [vmem:[%s5 + $0xcc] sm:$0xf] %vm1954, %v1843
  %2007 = vst.msk [vmem:[%s5 + $0xd0] sm:$0xf] %vm1954, %v1844
  %2008 = vst.msk [vmem:[%s5 + $0xd4] sm:$0xf] %vm1954, %v1845
  %2009 = vst.msk [vmem:[%s5 + $0xd8] sm:$0xf] %vm1954, %v1846
  %2010 = vst.msk [vmem:[%s5 + $0xdc] sm:$0xf] %vm1954, %v1847
  %2011 = vst.msk [vmem:[%s5 + $0xe0] sm:$0xf] %vm1954, %v1848
  %2012 = vst.msk [vmem:[%s5 + $0xe4] sm:$0xf] %vm1954, %v1849
  %2013 = vst.msk [vmem:[%s5 + $0xe8] sm:$0xf] %vm1954, %v1850
  %2014 = vst.msk [vmem:[%s5 + $0xec] sm:$0xf] %vm1954, %v1851
  %2015 = vst.msk [vmem:[%s5 + $0xf0] sm:$0xf] %vm1954, %v1852
  %2016 = vst.msk [vmem:[%s5 + $0xf4] sm:$0xf] %vm1954, %v1853
  %2017 = vst.msk [vmem:[%s5 + $0xf8] sm:$0xf] %vm1954, %v1854
  %2018 = vst.msk [vmem:[%s5 + $0xfc] sm:$0xf] %vm1954, %v1855
  %2019 = vst.msk [vmem:[%s5 + $0x100] sm:$0xf] %vm1954, %v1856
  %2020 = vst.msk [vmem:[%s5 + $0x104] sm:$0xf] %vm1954, %v1857
  %2021 = vst.msk [vmem:[%s5 + $0x108] sm:$0xf] %vm1954, %v1858
  %2022 = vst.msk [vmem:[%s5 + $0x10c] sm:$0xf] %vm1954, %v1859
  %2023 = vst.msk [vmem:[%s5 + $0x110] sm:$0xf] %vm1954, %v1860
  %2024 = vst.msk [vmem:[%s5 + $0x114] sm:$0xf] %vm1954, %v1861
  %2025 = vst.msk [vmem:[%s5 + $0x118] sm:$0xf] %vm1954, %v1862
  %2026 = vst.msk [vmem:[%s5 + $0x11c] sm:$0xf] %vm1954, %v1863
  %2027 = vst.msk [vmem:[%s5 + $0x120] sm:$0xf] %vm1954, %v1864
  %2028 = vst.msk [vmem:[%s5 + $0x124] sm:$0xf] %vm1954, %v1865
  %2029 = vst.msk [vmem:[%s5 + $0x128] sm:$0xf] %vm1954, %v1866
  %2030 = vst.msk [vmem:[%s5 + $0x12c] sm:$0xf] %vm1954, %v1867
  %2031 = vst.msk [vmem:[%s5 + $0x130] sm:$0xf] %vm1954, %v1868
  %2032 = vst.msk [vmem:[%s5 + $0x134] sm:$0xf] %vm1954, %v1869
  %2033 = vst.msk [vmem:[%s5 + $0x138] sm:$0xf] %vm1954, %v1870
  %2034 = vst.msk [vmem:[%s5 + $0x13c] sm:$0xf] %vm1954, %v1871
  %2035 = vst.msk [vmem:[%s5 + $0x140] sm:$0xf] %vm1954, %v1872
  // Predicated region
  $region22: #{tpu_custom_call.1} parent=0 // pred_check
    _
  $region23: #{tpu_custom_call.1} parent=0 // pred_check_branch
    %2037 = sbr.rel (0) target = $region25
  $region24: #{tpu_custom_call.1} parent=0 // pred_region
    _
  $region25: #{tpu_custom_call.1} parent=0 // pred_fallthru
    _
  // Predicated region
  $region26: #{tpu_custom_call.1} parent=0 // pred_check
    _
  $region27: #{tpu_custom_call.1} parent=0 // pred_check_branch
    %2039 = sbr.rel (0) target = $region29
  $region28: #{tpu_custom_call.1} parent=0 // pred_region
    _
  $region29: #{tpu_custom_call.1} parent=0 // pred_fallthru
    _

</llo_original>
